<compile_context>
chip_gen: v5e
topology: v5e:2x2
jax: 0.10.0
libtpu: 0.0.40
codegen_flags: <defaults>
</compile_context>

<pallas_src>
import functools

import jax
import jax.numpy as jnp
from jax.experimental import pallas as pl
from jax.experimental.pallas import tpu as pltpu

LANES = 128


# ----------------------------------------------------------------------------
# Fused kernel: (gather+conv) MXU matmuls + maxpool + linear + log-softmax.
# One batch *block* per grid step; the per-element loop is unrolled in-kernel.
# ----------------------------------------------------------------------------
def _discriminator_kernel(*refs, kernel_sizes, pool_lens, seq_len, vocab_pad,
                          b_blk, max_k):
    n = len(kernel_sizes)
    ids_ref = refs[0]                       # (b_blk, seq, 1)            int32
    tw_ref = refs[1]                        # (max_k, vocab_pad, 128)    f32
    lw_refs = refs[2:2 + n]                 # each (c_size, p_len, 128)  f32
    lb_ref = refs[2 + n]                    # (c_size, 1)                f32
    o_ref = refs[3 + n]                     # (b_blk, c_size, 1)         f32
    scr_refs = refs[4 + n:4 + n + max_k]    # max_k x VMEM (seq, 128)    f32

    iota_v = jax.lax.broadcasted_iota(jnp.int32, (seq_len, vocab_pad), 1)

    for b in range(b_blk):                  # whole block is one grid step
        # Fused embedding-gather + conv: E_j[t, :] = TW[j][ids[t], :]
        # (width i's channels live in lanes [i*C, (i+1)*C); taps j >= k_i and
        #  padded vocab rows are zero).  LHS is row-0 aligned, K = vocab_pad.
        onehot = (iota_v == ids_ref[b]).astype(jnp.float32)   # (seq, vocab_pad)
        for j in range(max_k):
            scr_refs[j][...] = jnp.dot(onehot, tw_ref[j],
                                       preferred_element_type=jnp.float32)

        # Per-width MaxPool1d(k, stride=k) + classifier (VPU); conv bias is
        # pre-folded into lb.  conv_k[r] = sum_{j<k} E_j[r + j]  (other widths'
        # lanes are zeroed in lw, so no lane slicing is needed), and
        # pooled_k[p] = max_{j2<k} conv_k[k*p + j2].
        logits = lb_ref[...]                                  # (c_size, 1)
        for idx, k in enumerate(kernel_sizes):
            p_len = pool_lens[idx]
            pooled = None
            for j2 in range(k):
                rows = scr_refs[0][pl.ds(j2, p_len, stride=k), :]
                for j in range(1, k):
                    rows = rows + scr_refs[j][pl.ds(j2 + j, p_len, stride=k), :]
                pooled = rows if pooled is None else jnp.maximum(pooled, rows)
            # (nested reduce kept — proven lowering path; cost is negligible)
            prod = pooled[None, :, :] * lw_refs[idx][...]     # (c_size, p_len, 128)
            logits = logits + jnp.sum(jnp.sum(prod, axis=2), axis=1,
                                      keepdims=True)

        # LogSoftmax over the class axis (sublane axis of the (c_size, 1) col).
        m = jnp.max(logits, axis=0, keepdims=True)
        shifted = logits - m
        lse = jnp.log(jnp.sum(jnp.exp(shifted), axis=0, keepdims=True))
        o_ref[b] = shifted - lse


# ----------------------------------------------------------------------------
# One-time parameter re-layout (hoisted out of the forward path).
# ----------------------------------------------------------------------------
def prepare_params(params, seq_len):
    table = params["embedding"].astype(jnp.float32)           # (vocab, embed)
    vocab = table.shape[0]
    kernel_sizes = tuple(int(k) for (k, _, _) in params["convs"])
    n = len(kernel_sizes)
    kernel_num = params["convs"][0][1].shape[-1]
    max_k = max(kernel_sizes)
    pool_lens = tuple((seq_len - k + 1) // k for k in kernel_sizes)
    p_tot = sum(pool_lens)

    assert n * kernel_num <= LANES, "all conv widths must fit in 128 lanes"
    lane_off = tuple(i * kernel_num for i in range(n))
    vocab_pad = ((vocab + LANES - 1) // LANES) * LANES

    # TW[j, v, :] = embedding row v contracted with conv tap j of every width,
    # packed lane-dense.  The in-kernel one_hot @ TW replaces gather + conv.
    tw = jnp.zeros((max_k, vocab_pad, LANES), jnp.float32)
    for i, (k, w, _b) in enumerate(params["convs"]):
        for j in range(k):
            blk = jnp.dot(table, w[j].astype(jnp.float32),
                          precision=jax.lax.Precision.HIGHEST)  # (vocab, C)
            tw = tw.at[j, :vocab, lane_off[i]:lane_off[i] + kernel_num].set(blk)

    # Re-order Linear(C*p_tot, c_size) from torch's flatten order
    # (feature = channel * p_tot + pooled_position) into per-width lane-padded
    # (c_size, P_k, 128) blocks; fold conv bias into the linear bias.
    lin_w = params["linear_w"].astype(jnp.float32)             # (C*p_tot, c_size)
    c_size = lin_w.shape[1]
    assert lin_w.shape[0] == kernel_num * p_tot
    w3 = lin_w.reshape(kernel_num, p_tot, c_size)
    lb = params["linear_b"].astype(jnp.float32)                # (c_size,)
    lws, off_p = [], 0
    for i, (k, _w, b) in enumerate(params["convs"]):
        p_len = pool_lens[i]
        chunk = w3[:, off_p:off_p + p_len, :]                  # (C, P_k, c_size)
        lw_i = jnp.zeros((c_size, p_len, LANES), jnp.float32)
        lw_i = lw_i.at[:, :, lane_off[i]:lane_off[i] + kernel_num].set(
            jnp.transpose(chunk, (2, 1, 0)))
        lws.append(lw_i)
        lb = lb + jnp.einsum("c,cpo->o", b.astype(jnp.float32), chunk)
        off_p += p_len

    return {"tw": tw, "lws": tuple(lws), "lb": lb.reshape(c_size, 1),
            "kernel_sizes": kernel_sizes, "pool_lens": pool_lens,
            "seq_len": seq_len, "vocab_pad": vocab_pad, "max_k": max_k,
            "c_size": c_size}


# ----------------------------------------------------------------------------
# Forward pass: single pallas_call, no XLA glue ops besides an int32 reshape.
# ----------------------------------------------------------------------------
def discriminator_forward(prep, x):
    """Inference forward pass (dropout p=0.2 is identity in eval mode)."""
    # TODO(synk): training-mode dropout (p=0.2) not implemented; eval identity.
    batch, seq_len = x.shape
    assert seq_len == prep["seq_len"]
    c_size, max_k = prep["c_size"], prep["max_k"]

    # Batch blocking: small batches -> one grid step; large -> blocks of 8.
    if batch <= 8:
        b_blk = batch
    elif batch % 8 == 0:
        b_blk = 8
    else:
        b_blk = batch                       # fallback: one (unrolled) block
    num_blocks = batch // b_blk

    ids = x.astype(jnp.int32).reshape(batch, seq_len, 1)

    kern = functools.partial(
        _discriminator_kernel,
        kernel_sizes=prep["kernel_sizes"], pool_lens=prep["pool_lens"],
        seq_len=seq_len, vocab_pad=prep["vocab_pad"], b_blk=b_blk, max_k=max_k)

    in_specs = [pl.BlockSpec((b_blk, seq_len, 1), lambda g: (g, 0, 0)),
                pl.BlockSpec(prep["tw"].shape, lambda g: (0, 0, 0))]
    in_specs += [pl.BlockSpec(w.shape, lambda g: (0, 0, 0)) for w in prep["lws"]]
    in_specs += [pl.BlockSpec(prep["lb"].shape, lambda g: (0, 0))]

    out = pl.pallas_call(
        kern,
        out_shape=jax.ShapeDtypeStruct((batch, c_size, 1), jnp.float32),
        grid=(num_blocks,),
        in_specs=in_specs,
        out_specs=pl.BlockSpec((b_blk, c_size, 1), lambda g: (g, 0, 0)),
        scratch_shapes=[pltpu.VMEM((seq_len, LANES), jnp.float32)
                        for _ in range(max_k)],
        compiler_params=pltpu.CompilerParams(
            dimension_semantics=("parallel",) if num_blocks > 1
            else ("arbitrary",)),
    )(ids, prep["tw"], *prep["lws"], prep["lb"])
    return out[:, :, 0]                                        # (B, c_size)


# ----------------------------------------------------------------------------
# Deterministic synthetic parameters + pure-JAX reference for verification.
# ----------------------------------------------------------------------------
def init_params(key, vocab_size, embed_size, c_size, kernel_num, kernel_sizes,
                linear_in):
    keys = jax.random.split(key, 3 + 2 * len(kernel_sizes))
    emb = jax.random.normal(keys[0], (vocab_size, embed_size), jnp.float32) * 0.1
    emb = emb.at[0].set(0.0)  # padding_idx=0
    convs = []
    for i, k in enumerate(kernel_sizes):
        w = jax.random.normal(keys[1 + 2 * i],
                              (k, embed_size, kernel_num), jnp.float32) * 0.1
        b = jax.random.normal(keys[2 + 2 * i], (kernel_num,), jnp.float32) * 0.1
        convs.append((k, w, b))
    lw = jax.random.normal(keys[-2], (linear_in, c_size), jnp.float32) * 0.02
    lb = jax.random.normal(keys[-1], (c_size,), jnp.float32) * 0.02
    return {"embedding": emb, "convs": convs, "linear_w": lw, "linear_b": lb}


def reference_forward(params, x):
    emb = jnp.take(params["embedding"], x, axis=0)
    b_sz, s, _ = emb.shape
    pools = []
    for (k, w, b) in params["convs"]:
        l_out = s - k + 1
        conv = sum(
            jnp.einsum("ble,ec->blc", emb[:, j:j + l_out, :], w[j],
                       precision=jax.lax.Precision.HIGHEST)
            for j in range(k)) + b
        p = l_out // k
        pooled = conv[:, :p * k, :].reshape(b_sz, p, k, -1).max(axis=2)
        pools.append(jnp.transpose(pooled, (0, 2, 1)))
    feat = jnp.concatenate(pools, axis=-1).reshape(b_sz, -1)
    logits = jnp.dot(feat, params["linear_w"],
                     precision=jax.lax.Precision.HIGHEST) + params["linear_b"]
    return jax.nn.log_softmax(logits, axis=1)


if __name__ == "__main__":
    # Shapes chosen so kernel_num * sum(pooled_lens) == 2200, matching the
    # hard-coded nn.Linear(2200, c_size):  50 * (27 + 17) = 2200.
    vocab_size, embed_size, c_size = 100, 32, 4
    kernel_num, kernel_sizes = 50, (2, 3)
    batch, seq_len = 2, 55

    key = jax.random.PRNGKey(0)
    pkey, xkey = jax.random.split(key)
    params = init_params(pkey, vocab_size, embed_size, c_size,
                         kernel_num, kernel_sizes, linear_in=2200)
    x = jax.random.randint(xkey, (batch, seq_len), 0, vocab_size,
                           dtype=jnp.int32)

    prep = prepare_params(params, seq_len)            # one-time re-layout
    out = discriminator_forward(prep, x)
    out = jax.block_until_ready(out)

    ref = reference_forward(params, x)
    assert out.shape == (batch, c_size)
    assert bool(jnp.allclose(out, ref, atol=2e-2, rtol=2e-2)), (out, ref)
    print("KERNEL_OK")
</pallas_src>

<mosaic_0001>
module attributes {stable_mosaic.version = 11 : i64} {
  func.func @_discriminator_kernel(%arg0: i32, %arg1: memref<2x55x1xi32, #tpu.memory_space<vmem>>, %arg2: memref<3x128x128xf32, #tpu.memory_space<vmem>>, %arg3: memref<4x27x128xf32, #tpu.memory_space<vmem>>, %arg4: memref<4x17x128xf32, #tpu.memory_space<vmem>>, %arg5: memref<4x1xf32, #tpu.memory_space<vmem>>, %arg6: memref<2x4x1xf32, #tpu.memory_space<vmem>>, %arg7: memref<55x128xf32, #tpu.memory_space<vmem>>, %arg8: memref<55x128xf32, #tpu.memory_space<vmem>>, %arg9: memref<55x128xf32, #tpu.memory_space<vmem>>) attributes {dimension_semantics = [#tpu.dimension_semantics<arbitrary>], iteration_bounds = array<i64: 1>, scalar_prefetch = 0 : i64, scratch_operands = 3 : i64, tpu.core_type = #tpu.core_type<tc>, window_params = [{transform_indices = @transform_0, window_bounds = array<i64: 2, 55, 1>}, {pipeline_mode = #tpu.pipeline_mode<synchronous>, transform_indices = @transform_1, window_bounds = array<i64: 3, 128, 128>}, {pipeline_mode = #tpu.pipeline_mode<synchronous>, transform_indices = @transform_2, window_bounds = array<i64: 4, 27, 128>}, {pipeline_mode = #tpu.pipeline_mode<synchronous>, transform_indices = @transform_3, window_bounds = array<i64: 4, 17, 128>}, {pipeline_mode = #tpu.pipeline_mode<synchronous>, transform_indices = @transform_4, window_bounds = array<i64: 4, 1>}, {transform_indices = @transform_5, window_bounds = array<i64: 2, 4, 1>}]} {
    %0 = tpu.iota {dimensions = array<i32: 1>} : vector<55x128xi32>
    %c0 = arith.constant 0 : index
    %c0_0 = arith.constant 0 : index
    %c0_1 = arith.constant 0 : index
    %1 = vector.load %arg1[%c0, %c0_0, %c0_1] : memref<2x55x1xi32, #tpu.memory_space<vmem>>, vector<1x55x1xi32>
    %2 = vector.shape_cast %1 : vector<1x55x1xi32> to vector<55x1xi32>
    %3 = vector.broadcast %2 : vector<55x1xi32> to vector<55x128xi32>
    %4 = arith.cmpi eq, %0, %3 : vector<55x128xi32>
    %5 = arith.extui %4 : vector<55x128xi1> to vector<55x128xi32>
    %6 = arith.sitofp %5 : vector<55x128xi32> to vector<55x128xf32>
    %c0_2 = arith.constant 0 : index
    %c0_3 = arith.constant 0 : index
    %c0_4 = arith.constant 0 : index
    %7 = vector.load %arg2[%c0_2, %c0_3, %c0_4] : memref<3x128x128xf32, #tpu.memory_space<vmem>>, vector<1x128x128xf32>
    %8 = vector.shape_cast %7 : vector<1x128x128xf32> to vector<128x128xf32>
    %cst = arith.constant dense<0.000000e+00> : vector<55x128xf32>
    %9 = tpu.matmul %6, %8, %cst {dimension_numbers = #tpu.dot_dimension_numbers<[1], [0], [0], [1], [0, 0, 1, 1], [], []>} : vector<55x128xf32>, vector<128x128xf32>, vector<55x128xf32> -> vector<55x128xf32>
    %c0_5 = arith.constant 0 : index
    %c0_6 = arith.constant 0 : index
    %10 = vector.load %arg7[%c0_5, %c0_6] : memref<55x128xf32, #tpu.memory_space<vmem>>, vector<55x128xf32>
    tpu.vector_store %arg7[%c0_5, %c0_6], %9 {strides = array<i32>} : memref<55x128xf32, #tpu.memory_space<vmem>>, vector<55x128xf32>,
    %c1 = arith.constant 1 : index
    %c0_7 = arith.constant 0 : index
    %c0_8 = arith.constant 0 : index
    %11 = vector.load %arg2[%c1, %c0_7, %c0_8] : memref<3x128x128xf32, #tpu.memory_space<vmem>>, vector<1x128x128xf32>
    %12 = vector.shape_cast %11 : vector<1x128x128xf32> to vector<128x128xf32>
    %cst_9 = arith.constant dense<0.000000e+00> : vector<55x128xf32>
    %13 = tpu.matmul %6, %12, %cst_9 {dimension_numbers = #tpu.dot_dimension_numbers<[1], [0], [0], [1], [0, 0, 1, 1], [], []>} : vector<55x128xf32>, vector<128x128xf32>, vector<55x128xf32> -> vector<55x128xf32>
    %c0_10 = arith.constant 0 : index
    %c0_11 = arith.constant 0 : index
    %14 = vector.load %arg8[%c0_10, %c0_11] : memref<55x128xf32, #tpu.memory_space<vmem>>, vector<55x128xf32>
    tpu.vector_store %arg8[%c0_10, %c0_11], %13 {strides = array<i32>} : memref<55x128xf32, #tpu.memory_space<vmem>>, vector<55x128xf32>,
    %c2 = arith.constant 2 : index
    %c0_12 = arith.constant 0 : index
    %c0_13 = arith.constant 0 : index
    %15 = vector.load %arg2[%c2, %c0_12, %c0_13] : memref<3x128x128xf32, #tpu.memory_space<vmem>>, vector<1x128x128xf32>
    %16 = vector.shape_cast %15 : vector<1x128x128xf32> to vector<128x128xf32>
    %cst_14 = arith.constant dense<0.000000e+00> : vector<55x128xf32>
    %17 = tpu.matmul %6, %16, %cst_14 {dimension_numbers = #tpu.dot_dimension_numbers<[1], [0], [0], [1], [0, 0, 1, 1], [], []>} : vector<55x128xf32>, vector<128x128xf32>, vector<55x128xf32> -> vector<55x128xf32>
    %c0_15 = arith.constant 0 : index
    %c0_16 = arith.constant 0 : index
    %18 = vector.load %arg9[%c0_15, %c0_16] : memref<55x128xf32, #tpu.memory_space<vmem>>, vector<55x128xf32>
    tpu.vector_store %arg9[%c0_15, %c0_16], %17 {strides = array<i32>} : memref<55x128xf32, #tpu.memory_space<vmem>>, vector<55x128xf32>,
    %c0_17 = arith.constant 0 : index
    %c0_18 = arith.constant 0 : index
    %19 = vector.load %arg5[%c0_17, %c0_18] : memref<4x1xf32, #tpu.memory_space<vmem>>, vector<4x1xf32>
    %c0_19 = arith.constant 0 : index
    %c0_20 = arith.constant 0 : index
    %20 = tpu.strided_load %arg7[%c0_19, %c0_20] {strides = array<i32: 2, 1>} : memref<55x128xf32, #tpu.memory_space<vmem>>, vector<27x128xf32>
    %c1_21 = arith.constant 1 : index
    %c0_22 = arith.constant 0 : index
    %21 = tpu.strided_load %arg8[%c1_21, %c0_22] {strides = array<i32: 2, 1>} : memref<55x128xf32, #tpu.memory_space<vmem>>, vector<27x128xf32>
    %22 = arith.addf %20, %21 : vector<27x128xf32>
    %c1_23 = arith.constant 1 : index
    %c0_24 = arith.constant 0 : index
    %23 = tpu.strided_load %arg7[%c1_23, %c0_24] {strides = array<i32: 2, 1>} : memref<55x128xf32, #tpu.memory_space<vmem>>, vector<27x128xf32>
    %c2_25 = arith.constant 2 : index
    %c0_26 = arith.constant 0 : index
    %24 = tpu.strided_load %arg8[%c2_25, %c0_26] {strides = array<i32: 2, 1>} : memref<55x128xf32, #tpu.memory_space<vmem>>, vector<27x128xf32>
    %25 = arith.addf %23, %24 : vector<27x128xf32>
    %26 = arith.maximumf %22, %25 : vector<27x128xf32>
    %27 = vector.shape_cast %26 : vector<27x128xf32> to vector<1x27x128xf32>
    %c0_27 = arith.constant 0 : index
    %c0_28 = arith.constant 0 : index
    %c0_29 = arith.constant 0 : index
    %28 = vector.load %arg3[%c0_27, %c0_28, %c0_29] : memref<4x27x128xf32, #tpu.memory_space<vmem>>, vector<4x27x128xf32>
    %29 = vector.broadcast %27 : vector<1x27x128xf32> to vector<4x27x128xf32>
    %30 = arith.mulf %29, %28 : vector<4x27x128xf32>
    %cst_30 = arith.constant dense<0.000000e+00> : vector<4x27xf32>
    %31 = vector.multi_reduction <add>, %30, %cst_30 [2] : vector<4x27x128xf32> to vector<4x27xf32>
    %cst_31 = arith.constant dense<0.000000e+00> : vector<4xf32>
    %32 = vector.multi_reduction <add>, %31, %cst_31 [1] : vector<4x27xf32> to vector<4xf32>
    %33 = vector.shape_cast %32 : vector<4xf32> to vector<4x1xf32>
    %34 = arith.addf %19, %33 : vector<4x1xf32>
    %c0_32 = arith.constant 0 : index
    %c0_33 = arith.constant 0 : index
    %35 = tpu.strided_load %arg7[%c0_32, %c0_33] {strides = array<i32: 3, 1>} : memref<55x128xf32, #tpu.memory_space<vmem>>, vector<17x128xf32>
    %c1_34 = arith.constant 1 : index
    %c0_35 = arith.constant 0 : index
    %36 = tpu.strided_load %arg8[%c1_34, %c0_35] {strides = array<i32: 3, 1>} : memref<55x128xf32, #tpu.memory_space<vmem>>, vector<17x128xf32>
    %37 = arith.addf %35, %36 : vector<17x128xf32>
    %c2_36 = arith.constant 2 : index
    %c0_37 = arith.constant 0 : index
    %38 = tpu.strided_load %arg9[%c2_36, %c0_37] {strides = array<i32: 3, 1>} : memref<55x128xf32, #tpu.memory_space<vmem>>, vector<17x128xf32>
    %39 = arith.addf %37, %38 : vector<17x128xf32>
    %c1_38 = arith.constant 1 : index
    %c0_39 = arith.constant 0 : index
    %40 = tpu.strided_load %arg7[%c1_38, %c0_39] {strides = array<i32: 3, 1>} : memref<55x128xf32, #tpu.memory_space<vmem>>, vector<17x128xf32>
    %c2_40 = arith.constant 2 : index
    %c0_41 = arith.constant 0 : index
    %41 = tpu.strided_load %arg8[%c2_40, %c0_41] {strides = array<i32: 3, 1>} : memref<55x128xf32, #tpu.memory_space<vmem>>, vector<17x128xf32>
    %42 = arith.addf %40, %41 : vector<17x128xf32>
    %c3 = arith.constant 3 : index
    %c0_42 = arith.constant 0 : index
    %43 = tpu.strided_load %arg9[%c3, %c0_42] {strides = array<i32: 3, 1>} : memref<55x128xf32, #tpu.memory_space<vmem>>, vector<17x128xf32>
    %44 = arith.addf %42, %43 : vector<17x128xf32>
    %45 = arith.maximumf %39, %44 : vector<17x128xf32>
    %c2_43 = arith.constant 2 : index
    %c0_44 = arith.constant 0 : index
    %46 = tpu.strided_load %arg7[%c2_43, %c0_44] {strides = array<i32: 3, 1>} : memref<55x128xf32, #tpu.memory_space<vmem>>, vector<17x128xf32>
    %c3_45 = arith.constant 3 : index
    %c0_46 = arith.constant 0 : index
    %47 = tpu.strided_load %arg8[%c3_45, %c0_46] {strides = array<i32: 3, 1>} : memref<55x128xf32, #tpu.memory_space<vmem>>, vector<17x128xf32>
    %48 = arith.addf %46, %47 : vector<17x128xf32>
    %c4 = arith.constant 4 : index
    %c0_47 = arith.constant 0 : index
    %49 = tpu.strided_load %arg9[%c4, %c0_47] {strides = array<i32: 3, 1>} : memref<55x128xf32, #tpu.memory_space<vmem>>, vector<17x128xf32>
    %50 = arith.addf %48, %49 : vector<17x128xf32>
    %51 = arith.maximumf %45, %50 : vector<17x128xf32>
    %52 = vector.shape_cast %51 : vector<17x128xf32> to vector<1x17x128xf32>
    %c0_48 = arith.constant 0 : index
    %c0_49 = arith.constant 0 : index
    %c0_50 = arith.constant 0 : index
    %53 = vector.load %arg4[%c0_48, %c0_49, %c0_50] : memref<4x17x128xf32, #tpu.memory_space<vmem>>, vector<4x17x128xf32>
    %54 = vector.broadcast %52 : vector<1x17x128xf32> to vector<4x17x128xf32>
    %55 = arith.mulf %54, %53 : vector<4x17x128xf32>
    %cst_51 = arith.constant dense<0.000000e+00> : vector<4x17xf32>
    %56 = vector.multi_reduction <add>, %55, %cst_51 [2] : vector<4x17x128xf32> to vector<4x17xf32>
    %cst_52 = arith.constant dense<0.000000e+00> : vector<4xf32>
    %57 = vector.multi_reduction <add>, %56, %cst_52 [1] : vector<4x17xf32> to vector<4xf32>
    %58 = vector.shape_cast %57 : vector<4xf32> to vector<4x1xf32>
    %59 = arith.addf %34, %58 : vector<4x1xf32>
    %cst_53 = arith.constant dense<0xFF800000> : vector<1xf32>
    %60 = vector.multi_reduction <maximumf>, %59, %cst_53 [0] : vector<4x1xf32> to vector<1xf32>
    %61 = vector.shape_cast %60 : vector<1xf32> to vector<1x1xf32>
    %62 = vector.broadcast %61 : vector<1x1xf32> to vector<4x1xf32>
    %63 = arith.subf %59, %62 : vector<4x1xf32>
    %64 = math.exp %63 : vector<4x1xf32>
    %cst_54 = arith.constant dense<0.000000e+00> : vector<1xf32>
    %65 = vector.multi_reduction <add>, %64, %cst_54 [0] : vector<4x1xf32> to vector<1xf32>
    %66 = vector.shape_cast %65 : vector<1xf32> to vector<1x1xf32>
    %67 = math.log %66 : vector<1x1xf32>
    %68 = vector.broadcast %67 : vector<1x1xf32> to vector<4x1xf32>
    %69 = arith.subf %63, %68 : vector<4x1xf32>
    %c0_55 = arith.constant 0 : index
    %c0_56 = arith.constant 0 : index
    %c0_57 = arith.constant 0 : index
    %70 = vector.load %arg6[%c0_55, %c0_56, %c0_57] : memref<2x4x1xf32, #tpu.memory_space<vmem>>, vector<1x4x1xf32>
    %71 = vector.shape_cast %70 : vector<1x4x1xf32> to vector<4x1xf32>
    %72 = vector.shape_cast %69 : vector<4x1xf32> to vector<1x4x1xf32>
    tpu.vector_store %arg6[%c0_55, %c0_56, %c0_57], %72 {strides = array<i32>} : memref<2x4x1xf32, #tpu.memory_space<vmem>>, vector<1x4x1xf32>,
    %c1_58 = arith.constant 1 : index
    %c0_59 = arith.constant 0 : index
    %c0_60 = arith.constant 0 : index
    %73 = vector.load %arg1[%c1_58, %c0_59, %c0_60] : memref<2x55x1xi32, #tpu.memory_space<vmem>>, vector<1x55x1xi32>
    %74 = vector.shape_cast %73 : vector<1x55x1xi32> to vector<55x1xi32>
    %75 = vector.broadcast %74 : vector<55x1xi32> to vector<55x128xi32>
    %76 = arith.cmpi eq, %0, %75 : vector<55x128xi32>
    %77 = arith.extui %76 : vector<55x128xi1> to vector<55x128xi32>
    %78 = arith.sitofp %77 : vector<55x128xi32> to vector<55x128xf32>
    %c0_61 = arith.constant 0 : index
    %c0_62 = arith.constant 0 : index
    %c0_63 = arith.constant 0 : index
    %79 = vector.load %arg2[%c0_61, %c0_62, %c0_63] : memref<3x128x128xf32, #tpu.memory_space<vmem>>, vector<1x128x128xf32>
    %80 = vector.shape_cast %79 : vector<1x128x128xf32> to vector<128x128xf32>
    %cst_64 = arith.constant dense<0.000000e+00> : vector<55x128xf32>
    %81 = tpu.matmul %78, %80, %cst_64 {dimension_numbers = #tpu.dot_dimension_numbers<[1], [0], [0], [1], [0, 0, 1, 1], [], []>} : vector<55x128xf32>, vector<128x128xf32>, vector<55x128xf32> -> vector<55x128xf32>
    %c0_65 = arith.constant 0 : index
    %c0_66 = arith.constant 0 : index
    %82 = vector.load %arg7[%c0_65, %c0_66] : memref<55x128xf32, #tpu.memory_space<vmem>>, vector<55x128xf32>
    tpu.vector_store %arg7[%c0_65, %c0_66], %81 {strides = array<i32>} : memref<55x128xf32, #tpu.memory_space<vmem>>, vector<55x128xf32>,
    %c1_67 = arith.constant 1 : index
    %c0_68 = arith.constant 0 : index
    %c0_69 = arith.constant 0 : index
    %83 = vector.load %arg2[%c1_67, %c0_68, %c0_69] : memref<3x128x128xf32, #tpu.memory_space<vmem>>, vector<1x128x128xf32>
    %84 = vector.shape_cast %83 : vector<1x128x128xf32> to vector<128x128xf32>
    %cst_70 = arith.constant dense<0.000000e+00> : vector<55x128xf32>
    %85 = tpu.matmul %78, %84, %cst_70 {dimension_numbers = #tpu.dot_dimension_numbers<[1], [0], [0], [1], [0, 0, 1, 1], [], []>} : vector<55x128xf32>, vector<128x128xf32>, vector<55x128xf32> -> vector<55x128xf32>
    %c0_71 = arith.constant 0 : index
    %c0_72 = arith.constant 0 : index
    %86 = vector.load %arg8[%c0_71, %c0_72] : memref<55x128xf32, #tpu.memory_space<vmem>>, vector<55x128xf32>
    tpu.vector_store %arg8[%c0_71, %c0_72], %85 {strides = array<i32>} : memref<55x128xf32, #tpu.memory_space<vmem>>, vector<55x128xf32>,
    %c2_73 = arith.constant 2 : index
    %c0_74 = arith.constant 0 : index
    %c0_75 = arith.constant 0 : index
    %87 = vector.load %arg2[%c2_73, %c0_74, %c0_75] : memref<3x128x128xf32, #tpu.memory_space<vmem>>, vector<1x128x128xf32>
    %88 = vector.shape_cast %87 : vector<1x128x128xf32> to vector<128x128xf32>
    %cst_76 = arith.constant dense<0.000000e+00> : vector<55x128xf32>
    %89 = tpu.matmul %78, %88, %cst_76 {dimension_numbers = #tpu.dot_dimension_numbers<[1], [0], [0], [1], [0, 0, 1, 1], [], []>} : vector<55x128xf32>, vector<128x128xf32>, vector<55x128xf32> -> vector<55x128xf32>
    %c0_77 = arith.constant 0 : index
    %c0_78 = arith.constant 0 : index
    %90 = vector.load %arg9[%c0_77, %c0_78] : memref<55x128xf32, #tpu.memory_space<vmem>>, vector<55x128xf32>
    tpu.vector_store %arg9[%c0_77, %c0_78], %89 {strides = array<i32>} : memref<55x128xf32, #tpu.memory_space<vmem>>, vector<55x128xf32>,
    %c0_79 = arith.constant 0 : index
    %c0_80 = arith.constant 0 : index
    %91 = vector.load %arg5[%c0_79, %c0_80] : memref<4x1xf32, #tpu.memory_space<vmem>>, vector<4x1xf32>
    %c0_81 = arith.constant 0 : index
    %c0_82 = arith.constant 0 : index
    %92 = tpu.strided_load %arg7[%c0_81, %c0_82] {strides = array<i32: 2, 1>} : memref<55x128xf32, #tpu.memory_space<vmem>>, vector<27x128xf32>
    %c1_83 = arith.constant 1 : index
    %c0_84 = arith.constant 0 : index
    %93 = tpu.strided_load %arg8[%c1_83, %c0_84] {strides = array<i32: 2, 1>} : memref<55x128xf32, #tpu.memory_space<vmem>>, vector<27x128xf32>
    %94 = arith.addf %92, %93 : vector<27x128xf32>
    %c1_85 = arith.constant 1 : index
    %c0_86 = arith.constant 0 : index
    %95 = tpu.strided_load %arg7[%c1_85, %c0_86] {strides = array<i32: 2, 1>} : memref<55x128xf32, #tpu.memory_space<vmem>>, vector<27x128xf32>
    %c2_87 = arith.constant 2 : index
    %c0_88 = arith.constant 0 : index
    %96 = tpu.strided_load %arg8[%c2_87, %c0_88] {strides = array<i32: 2, 1>} : memref<55x128xf32, #tpu.memory_space<vmem>>, vector<27x128xf32>
    %97 = arith.addf %95, %96 : vector<27x128xf32>
    %98 = arith.maximumf %94, %97 : vector<27x128xf32>
    %99 = vector.shape_cast %98 : vector<27x128xf32> to vector<1x27x128xf32>
    %c0_89 = arith.constant 0 : index
    %c0_90 = arith.constant 0 : index
    %c0_91 = arith.constant 0 : index
    %100 = vector.load %arg3[%c0_89, %c0_90, %c0_91] : memref<4x27x128xf32, #tpu.memory_space<vmem>>, vector<4x27x128xf32>
    %101 = vector.broadcast %99 : vector<1x27x128xf32> to vector<4x27x128xf32>
    %102 = arith.mulf %101, %100 : vector<4x27x128xf32>
    %cst_92 = arith.constant dense<0.000000e+00> : vector<4x27xf32>
    %103 = vector.multi_reduction <add>, %102, %cst_92 [2] : vector<4x27x128xf32> to vector<4x27xf32>
    %cst_93 = arith.constant dense<0.000000e+00> : vector<4xf32>
    %104 = vector.multi_reduction <add>, %103, %cst_93 [1] : vector<4x27xf32> to vector<4xf32>
    %105 = vector.shape_cast %104 : vector<4xf32> to vector<4x1xf32>
    %106 = arith.addf %91, %105 : vector<4x1xf32>
    %c0_94 = arith.constant 0 : index
    %c0_95 = arith.constant 0 : index
    %107 = tpu.strided_load %arg7[%c0_94, %c0_95] {strides = array<i32: 3, 1>} : memref<55x128xf32, #tpu.memory_space<vmem>>, vector<17x128xf32>
    %c1_96 = arith.constant 1 : index
    %c0_97 = arith.constant 0 : index
    %108 = tpu.strided_load %arg8[%c1_96, %c0_97] {strides = array<i32: 3, 1>} : memref<55x128xf32, #tpu.memory_space<vmem>>, vector<17x128xf32>
    %109 = arith.addf %107, %108 : vector<17x128xf32>
    %c2_98 = arith.constant 2 : index
    %c0_99 = arith.constant 0 : index
    %110 = tpu.strided_load %arg9[%c2_98, %c0_99] {strides = array<i32: 3, 1>} : memref<55x128xf32, #tpu.memory_space<vmem>>, vector<17x128xf32>
    %111 = arith.addf %109, %110 : vector<17x128xf32>
    %c1_100 = arith.constant 1 : index
    %c0_101 = arith.constant 0 : index
    %112 = tpu.strided_load %arg7[%c1_100, %c0_101] {strides = array<i32: 3, 1>} : memref<55x128xf32, #tpu.memory_space<vmem>>, vector<17x128xf32>
    %c2_102 = arith.constant 2 : index
    %c0_103 = arith.constant 0 : index
    %113 = tpu.strided_load %arg8[%c2_102, %c0_103] {strides = array<i32: 3, 1>} : memref<55x128xf32, #tpu.memory_space<vmem>>, vector<17x128xf32>
    %114 = arith.addf %112, %113 : vector<17x128xf32>
    %c3_104 = arith.constant 3 : index
    %c0_105 = arith.constant 0 : index
    %115 = tpu.strided_load %arg9[%c3_104, %c0_105] {strides = array<i32: 3, 1>} : memref<55x128xf32, #tpu.memory_space<vmem>>, vector<17x128xf32>
    %116 = arith.addf %114, %115 : vector<17x128xf32>
    %117 = arith.maximumf %111, %116 : vector<17x128xf32>
    %c2_106 = arith.constant 2 : index
    %c0_107 = arith.constant 0 : index
    %118 = tpu.strided_load %arg7[%c2_106, %c0_107] {strides = array<i32: 3, 1>} : memref<55x128xf32, #tpu.memory_space<vmem>>, vector<17x128xf32>
    %c3_108 = arith.constant 3 : index
    %c0_109 = arith.constant 0 : index
    %119 = tpu.strided_load %arg8[%c3_108, %c0_109] {strides = array<i32: 3, 1>} : memref<55x128xf32, #tpu.memory_space<vmem>>, vector<17x128xf32>
    %120 = arith.addf %118, %119 : vector<17x128xf32>
    %c4_110 = arith.constant 4 : index
    %c0_111 = arith.constant 0 : index
    %121 = tpu.strided_load %arg9[%c4_110, %c0_111] {strides = array<i32: 3, 1>} : memref<55x128xf32, #tpu.memory_space<vmem>>, vector<17x128xf32>
    %122 = arith.addf %120, %121 : vector<17x128xf32>
    %123 = arith.maximumf %117, %122 : vector<17x128xf32>
    %124 = vector.shape_cast %123 : vector<17x128xf32> to vector<1x17x128xf32>
    %c0_112 = arith.constant 0 : index
    %c0_113 = arith.constant 0 : index
    %c0_114 = arith.constant 0 : index
    %125 = vector.load %arg4[%c0_112, %c0_113, %c0_114] : memref<4x17x128xf32, #tpu.memory_space<vmem>>, vector<4x17x128xf32>
    %126 = vector.broadcast %124 : vector<1x17x128xf32> to vector<4x17x128xf32>
    %127 = arith.mulf %126, %125 : vector<4x17x128xf32>
    %cst_115 = arith.constant dense<0.000000e+00> : vector<4x17xf32>
    %128 = vector.multi_reduction <add>, %127, %cst_115 [2] : vector<4x17x128xf32> to vector<4x17xf32>
    %cst_116 = arith.constant dense<0.000000e+00> : vector<4xf32>
    %129 = vector.multi_reduction <add>, %128, %cst_116 [1] : vector<4x17xf32> to vector<4xf32>
    %130 = vector.shape_cast %129 : vector<4xf32> to vector<4x1xf32>
    %131 = arith.addf %106, %130 : vector<4x1xf32>
    %cst_117 = arith.constant dense<0xFF800000> : vector<1xf32>
    %132 = vector.multi_reduction <maximumf>, %131, %cst_117 [0] : vector<4x1xf32> to vector<1xf32>
    %133 = vector.shape_cast %132 : vector<1xf32> to vector<1x1xf32>
    %134 = vector.broadcast %133 : vector<1x1xf32> to vector<4x1xf32>
    %135 = arith.subf %131, %134 : vector<4x1xf32>
    %136 = math.exp %135 : vector<4x1xf32>
    %cst_118 = arith.constant dense<0.000000e+00> : vector<1xf32>
    %137 = vector.multi_reduction <add>, %136, %cst_118 [0] : vector<4x1xf32> to vector<1xf32>
    %138 = vector.shape_cast %137 : vector<1xf32> to vector<1x1xf32>
    %139 = math.log %138 : vector<1x1xf32>
    %140 = vector.broadcast %139 : vector<1x1xf32> to vector<4x1xf32>
    %141 = arith.subf %135, %140 : vector<4x1xf32>
    %c1_119 = arith.constant 1 : index
    %c0_120 = arith.constant 0 : index
    %c0_121 = arith.constant 0 : index
    %142 = vector.load %arg6[%c1_119, %c0_120, %c0_121] : memref<2x4x1xf32, #tpu.memory_space<vmem>>, vector<1x4x1xf32>
    %143 = vector.shape_cast %142 : vector<1x4x1xf32> to vector<4x1xf32>
    %144 = vector.shape_cast %141 : vector<4x1xf32> to vector<1x4x1xf32>
    tpu.vector_store %arg6[%c1_119, %c0_120, %c0_121], %144 {strides = array<i32>} : memref<2x4x1xf32, #tpu.memory_space<vmem>>, vector<1x4x1xf32>,
    return
  }
  func.func @transform_0(%arg0: i32) -> (i32, i32, i32) {
    %c0_i32 = arith.constant 0 : i32
    %c0_i32_0 = arith.constant 0 : i32
    %c0_i32_1 = arith.constant 0 : i32
    return %arg0, %c0_i32, %c0_i32_0 : i32, i32, i32
  }
  func.func @transform_1(%arg0: i32) -> (i32, i32, i32) {
    %c0_i32 = arith.constant 0 : i32
    %c0_i32_0 = arith.constant 0 : i32
    %c0_i32_1 = arith.constant 0 : i32
    %c0_i32_2 = arith.constant 0 : i32
    return %c0_i32, %c0_i32_0, %c0_i32_1 : i32, i32, i32
  }
  func.func @transform_2(%arg0: i32) -> (i32, i32, i32) {
    %c0_i32 = arith.constant 0 : i32
    %c0_i32_0 = arith.constant 0 : i32
    %c0_i32_1 = arith.constant 0 : i32
    %c0_i32_2 = arith.constant 0 : i32
    return %c0_i32, %c0_i32_0, %c0_i32_1 : i32, i32, i32
  }
  func.func @transform_3(%arg0: i32) -> (i32, i32, i32) {
    %c0_i32 = arith.constant 0 : i32
    %c0_i32_0 = arith.constant 0 : i32
    %c0_i32_1 = arith.constant 0 : i32
    %c0_i32_2 = arith.constant 0 : i32
    return %c0_i32, %c0_i32_0, %c0_i32_1 : i32, i32, i32
  }
  func.func @transform_4(%arg0: i32) -> (i32, i32) {
    %c0_i32 = arith.constant 0 : i32
    %c0_i32_0 = arith.constant 0 : i32
    %c0_i32_1 = arith.constant 0 : i32
    return %c0_i32, %c0_i32_0 : i32, i32
  }
  func.func @transform_5(%arg0: i32) -> (i32, i32, i32) {
    %c0_i32 = arith.constant 0 : i32
    %c0_i32_0 = arith.constant 0 : i32
    %c0_i32_1 = arith.constant 0 : i32
    return %arg0, %c0_i32, %c0_i32_0 : i32, i32, i32
  }
}

</mosaic_0001>

<llo_original>
// kernel: tpu_custom_call.1
$region0: #{tpu_custom_call.1}
  #allocation0 [shape = 'u32[]', space=smem, size = 0x4, offset = 0x4, fixed_abs, tag = 'smem constant byte address 0x4 - core index']
  #allocation1 [shape = 'u32[72,128]{1,0:T(1,128)}', space=vmem, size = 0x9000, scoped, tag = 'internal scratch']
  #allocation2 [shape = 'f32[55,128]{1,0:T(8,128)}', space=vmem, size = 0x7000, scoped, tag = 'scratch operand']
  #allocation3 [shape = 'f32[55,128]{1,0:T(8,128)}', space=vmem, size = 0x7000, scoped, tag = 'scratch operand']
  #allocation4 [shape = 'f32[55,128]{1,0:T(8,128)}', space=vmem, size = 0x7000, scoped, tag = 'scratch operand']
  %s0 = inlined_call_operand.vmem [shape: s32[2,55,1], index: 0, kind: input, shape index: {}]
  %s1 = inlined_call_operand.vmem [shape: f32[3,128,128], index: 1, kind: input, shape index: {}]
  %s2 = inlined_call_operand.vmem [shape: f32[4,27,128], index: 2, kind: input, shape index: {}]
  %s3 = inlined_call_operand.vmem [shape: f32[4,17,128], index: 3, kind: input, shape index: {}]
  %s4 = inlined_call_operand.vmem [shape: f32[4,1], index: 4, kind: input, shape index: {}]
  %s5 = inlined_call_operand.vmem [shape: f32[2,4,1], index: 5, kind: output, shape index: {}]
  %s6 = sld [smem:[#allocation0]]
  $region30: #{tpu_custom_call.1} parent=0
    _
  %s8 = ssub.s32 1, %s6
  %s9 = scalar_select 0, %s8, %s6
  // Predicated region
  $region2: #{tpu_custom_call.1} parent=0 // pred_check
    _
  $region3: #{tpu_custom_call.1} parent=0 // pred_check_branch
    %11 = sbr.rel (0) target = $region5
  $region4: #{tpu_custom_call.1} parent=0 // pred_region
    _
  $region5: #{tpu_custom_call.1} parent=0 // pred_fallthru
    _
  // Predicated region
  $region6: #{tpu_custom_call.1} parent=0 // pred_check
    _
  $region7: #{tpu_custom_call.1} parent=0 // pred_check_branch
    %13 = sbr.rel (0) target = $region9
  $region8: #{tpu_custom_call.1} parent=0 // pred_region
    _
  $region9: #{tpu_custom_call.1} parent=0 // pred_fallthru
    _
  // Predicated region
  $region10: #{tpu_custom_call.1} parent=0 // pred_check
    _
  $region11: #{tpu_custom_call.1} parent=0 // pred_check_branch
    %15 = sbr.rel (0) target = $region13
  $region12: #{tpu_custom_call.1} parent=0 // pred_region
    _
  $region13: #{tpu_custom_call.1} parent=0 // pred_fallthru
    _
  // Predicated region
  $region14: #{tpu_custom_call.1} parent=0 // pred_check
    _
  $region15: #{tpu_custom_call.1} parent=0 // pred_check_branch
    %17 = sbr.rel (0) target = $region17
  $region16: #{tpu_custom_call.1} parent=0 // pred_region
    _
  $region17: #{tpu_custom_call.1} parent=0 // pred_fallthru
    _
  // Predicated region
  $region18: #{tpu_custom_call.1} parent=0 // pred_check
    _
  $region19: #{tpu_custom_call.1} parent=0 // pred_check_branch
    %19 = sbr.rel (0) target = $region21
  $region20: #{tpu_custom_call.1} parent=0 // pred_region
    _
  $region21: #{tpu_custom_call.1} parent=0 // pred_fallthru
    _
  %v20 = vlaneseq
  %v21 = vand.u32 %v20, 127
  %v22 = vld [vmem:[%s0] sm:$0xff]
  %v23 = vld [vmem:[%s0 + $0x8] sm:$0xff]
  %v24 = vld [vmem:[%s0 + $0x10] sm:$0xff]
  %v25 = vld [vmem:[%s0 + $0x18] sm:$0xff]
  %v26 = vld [vmem:[%s0 + $0x20] sm:$0xff]
  %v27 = vld [vmem:[%s0 + $0x28] sm:$0xff]
  %v28 = vld [vmem:[%s0 + $0x30] sm:$0x7f]
  %29 = vset.pattern.permute.xlu0 0
  %30 = vperm.xlu0 %29, %v22
  %v31 = vpop.permute.xlu0 %30
  %32 = vset.pattern.permute.xlu0 0
  %33 = vperm.xlu0 %32, %v23
  %v34 = vpop.permute.xlu0 %33
  %35 = vset.pattern.permute.xlu0 0
  %36 = vperm.xlu0 %35, %v24
  %v37 = vpop.permute.xlu0 %36
  %38 = vset.pattern.permute.xlu0 0
  %39 = vperm.xlu0 %38, %v25
  %v40 = vpop.permute.xlu0 %39
  %41 = vset.pattern.permute.xlu0 0
  %42 = vperm.xlu0 %41, %v26
  %v43 = vpop.permute.xlu0 %42
  %44 = vset.pattern.permute.xlu0 0
  %45 = vperm.xlu0 %44, %v27
  %v46 = vpop.permute.xlu0 %45
  %47 = vset.pattern.permute.xlu0 0
  %48 = vperm.xlu0 %47, %v28
  %v49 = vpop.permute.xlu0 %48
  %vm50 = vcmp.eq.s32.totalorder %v21, %v31
  %vm51 = vcmp.eq.s32.totalorder %v21, %v34
  %vm52 = vcmp.eq.s32.totalorder %v21, %v37
  %vm53 = vcmp.eq.s32.totalorder %v21, %v40
  %vm54 = vcmp.eq.s32.totalorder %v21, %v43
  %vm55 = vcmp.eq.s32.totalorder %v21, %v46
  %vm56 = vcmp.eq.s32.totalorder %v21, %v49
  %v57 = vsel %vm50, 1, 0
  %v58 = vsel %vm51, 1, 0
  %v59 = vsel %vm52, 1, 0
  %v60 = vsel %vm53, 1, 0
  %v61 = vsel %vm54, 1, 0
  %v62 = vsel %vm55, 1, 0
  %v63 = vsel %vm56, 1, 0
  %v64 = vcvt.s32.f32 %v57
  %v65 = vcvt.s32.f32 %v58
  %v66 = vcvt.s32.f32 %v59
  %v67 = vcvt.s32.f32 %v60
  %v68 = vcvt.s32.f32 %v61
  %v69 = vcvt.s32.f32 %v62
  %v70 = vcvt.s32.f32 %v63
  %v71 = vld [vmem:[%s1] sm:$0xff]
  %v72 = vld [vmem:[%s1 + $0x8] sm:$0xff]
  %v73 = vld [vmem:[%s1 + $0x10] sm:$0xff]
  %v74 = vld [vmem:[%s1 + $0x18] sm:$0xff]
  %v75 = vld [vmem:[%s1 + $0x20] sm:$0xff]
  %v76 = vld [vmem:[%s1 + $0x28] sm:$0xff]
  %v77 = vld [vmem:[%s1 + $0x30] sm:$0xff]
  %v78 = vld [vmem:[%s1 + $0x38] sm:$0xff]
  %v79 = vld [vmem:[%s1 + $0x40] sm:$0xff]
  %v80 = vld [vmem:[%s1 + $0x48] sm:$0xff]
  %v81 = vld [vmem:[%s1 + $0x50] sm:$0xff]
  %v82 = vld [vmem:[%s1 + $0x58] sm:$0xff]
  %v83 = vld [vmem:[%s1 + $0x60] sm:$0xff]
  %v84 = vld [vmem:[%s1 + $0x68] sm:$0xff]
  %v85 = vld [vmem:[%s1 + $0x70] sm:$0xff]
  %v86 = vld [vmem:[%s1 + $0x78] sm:$0xff]
  %87 = vmatpush.msra.mxu0 %v86
  %88 = vmatpush.msra.mxu0 %v85
  %89 = vmatpush.msra.mxu0 %v84
  %90 = vmatpush.msra.mxu0 %v83
  %91 = vmatpush.msra.mxu0 %v82
  %92 = vmatpush.msra.mxu0 %v81
  %93 = vmatpush.msra.mxu0 %v80
  %94 = vmatpush.msra.mxu0 %v79
  %95 = vmatpush.msra.mxu0 %v78
  %96 = vmatpush.msra.mxu0 %v77
  %97 = vmatpush.msra.mxu0 %v76
  %98 = vmatpush.msra.mxu0 %v75
  %99 = vmatpush.msra.mxu0 %v74
  %100 = vmatpush.msra.mxu0 %v73
  %101 = vmatpush.msra.mxu0 %v72
  %102 = vmatpush.msra.mxu0 %v71
  %103 = vmatmul.f32.gmra.mxu0 %v64
  %v104 = vpop.f32.mrf.mxu0
  %v105 = vadd.f32 0.0, %v104
  %106 = vmatmul.f32.gmra.mxu0 %v65
  %v107 = vpop.f32.mrf.mxu0
  %v108 = vadd.f32 0.0, %v107
  %109 = vmatmul.f32.gmra.mxu0 %v66
  %v110 = vpop.f32.mrf.mxu0
  %v111 = vadd.f32 0.0, %v110
  %112 = vmatmul.f32.gmra.mxu0 %v67
  %v113 = vpop.f32.mrf.mxu0
  %v114 = vadd.f32 0.0, %v113
  %115 = vmatmul.f32.gmra.mxu0 %v68
  %v116 = vpop.f32.mrf.mxu0
  %v117 = vadd.f32 0.0, %v116
  %118 = vmatmul.f32.gmra.mxu0 %v69
  %v119 = vpop.f32.mrf.mxu0
  %v120 = vadd.f32 0.0, %v119
  %121 = vmatmul.f32.gmra.mxu0 %v70
  %v122 = vpop.f32.mrf.mxu0
  %v123 = vadd.f32 0.0, %v122
  %124 = vdwg.mxu0
  %125 = vst [vmem:[#allocation2] sm:$0xff] %v105
  %126 = vst [vmem:[#allocation2 + $0x8] sm:$0xff] %v108
  %127 = vst [vmem:[#allocation2 + $0x10] sm:$0xff] %v111
  %128 = vst [vmem:[#allocation2 + $0x18] sm:$0xff] %v114
  %129 = vst [vmem:[#allocation2 + $0x20] sm:$0xff] %v117
  %130 = vst [vmem:[#allocation2 + $0x28] sm:$0xff] %v120
  %131 = vst [vmem:[#allocation2 + $0x30] sm:$0x7f] %v123
  %s132 = scalar_lea.vmem %s1, 128
  %v133 = vld [vmem:[%s132] sm:$0xff]
  %v134 = vld [vmem:[%s132 + $0x8] sm:$0xff]
  %v135 = vld [vmem:[%s132 + $0x10] sm:$0xff]
  %v136 = vld [vmem:[%s132 + $0x18] sm:$0xff]
  %v137 = vld [vmem:[%s132 + $0x20] sm:$0xff]
  %v138 = vld [vmem:[%s132 + $0x28] sm:$0xff]
  %v139 = vld [vmem:[%s132 + $0x30] sm:$0xff]
  %v140 = vld [vmem:[%s132 + $0x38] sm:$0xff]
  %v141 = vld [vmem:[%s132 + $0x40] sm:$0xff]
  %v142 = vld [vmem:[%s132 + $0x48] sm:$0xff]
  %v143 = vld [vmem:[%s132 + $0x50] sm:$0xff]
  %v144 = vld [vmem:[%s132 + $0x58] sm:$0xff]
  %v145 = vld [vmem:[%s132 + $0x60] sm:$0xff]
  %v146 = vld [vmem:[%s132 + $0x68] sm:$0xff]
  %v147 = vld [vmem:[%s132 + $0x70] sm:$0xff]
  %v148 = vld [vmem:[%s132 + $0x78] sm:$0xff]
  %149 = vmatpush.msra.mxu0 %v148
  %150 = vmatpush.msra.mxu0 %v147
  %151 = vmatpush.msra.mxu0 %v146
  %152 = vmatpush.msra.mxu0 %v145
  %153 = vmatpush.msra.mxu0 %v144
  %154 = vmatpush.msra.mxu0 %v143
  %155 = vmatpush.msra.mxu0 %v142
  %156 = vmatpush.msra.mxu0 %v141
  %157 = vmatpush.msra.mxu0 %v140
  %158 = vmatpush.msra.mxu0 %v139
  %159 = vmatpush.msra.mxu0 %v138
  %160 = vmatpush.msra.mxu0 %v137
  %161 = vmatpush.msra.mxu0 %v136
  %162 = vmatpush.msra.mxu0 %v135
  %163 = vmatpush.msra.mxu0 %v134
  %164 = vmatpush.msra.mxu0 %v133
  %165 = vmatmul.f32.gmra.mxu0 %v64
  %v166 = vpop.f32.mrf.mxu0
  %v167 = vadd.f32 0.0, %v166
  %168 = vmatmul.f32.gmra.mxu0 %v65
  %v169 = vpop.f32.mrf.mxu0
  %v170 = vadd.f32 0.0, %v169
  %171 = vmatmul.f32.gmra.mxu0 %v66
  %v172 = vpop.f32.mrf.mxu0
  %v173 = vadd.f32 0.0, %v172
  %174 = vmatmul.f32.gmra.mxu0 %v67
  %v175 = vpop.f32.mrf.mxu0
  %v176 = vadd.f32 0.0, %v175
  %177 = vmatmul.f32.gmra.mxu0 %v68
  %v178 = vpop.f32.mrf.mxu0
  %v179 = vadd.f32 0.0, %v178
  %180 = vmatmul.f32.gmra.mxu0 %v69
  %v181 = vpop.f32.mrf.mxu0
  %v182 = vadd.f32 0.0, %v181
  %183 = vmatmul.f32.gmra.mxu0 %v70
  %v184 = vpop.f32.mrf.mxu0
  %v185 = vadd.f32 0.0, %v184
  %186 = vdwg.mxu0
  %187 = vst [vmem:[#allocation3] sm:$0xff] %v167
  %188 = vst [vmem:[#allocation3 + $0x8] sm:$0xff] %v170
  %189 = vst [vmem:[#allocation3 + $0x10] sm:$0xff] %v173
  %190 = vst [vmem:[#allocation3 + $0x18] sm:$0xff] %v176
  %191 = vst [vmem:[#allocation3 + $0x20] sm:$0xff] %v179
  %192 = vst [vmem:[#allocation3 + $0x28] sm:$0xff] %v182
  %193 = vst [vmem:[#allocation3 + $0x30] sm:$0x7f] %v185
  %s194 = scalar_lea.vmem %s1, 256
  %v195 = vld [vmem:[%s194] sm:$0xff]
  %v196 = vld [vmem:[%s194 + $0x8] sm:$0xff]
  %v197 = vld [vmem:[%s194 + $0x10] sm:$0xff]
  %v198 = vld [vmem:[%s194 + $0x18] sm:$0xff]
  %v199 = vld [vmem:[%s194 + $0x20] sm:$0xff]
  %v200 = vld [vmem:[%s194 + $0x28] sm:$0xff]
  %v201 = vld [vmem:[%s194 + $0x30] sm:$0xff]
  %v202 = vld [vmem:[%s194 + $0x38] sm:$0xff]
  %v203 = vld [vmem:[%s194 + $0x40] sm:$0xff]
  %v204 = vld [vmem:[%s194 + $0x48] sm:$0xff]
  %v205 = vld [vmem:[%s194 + $0x50] sm:$0xff]
  %v206 = vld [vmem:[%s194 + $0x58] sm:$0xff]
  %v207 = vld [vmem:[%s194 + $0x60] sm:$0xff]
  %v208 = vld [vmem:[%s194 + $0x68] sm:$0xff]
  %v209 = vld [vmem:[%s194 + $0x70] sm:$0xff]
  %v210 = vld [vmem:[%s194 + $0x78] sm:$0xff]
  %211 = vmatpush.msra.mxu0 %v210
  %212 = vmatpush.msra.mxu0 %v209
  %213 = vmatpush.msra.mxu0 %v208
  %214 = vmatpush.msra.mxu0 %v207
  %215 = vmatpush.msra.mxu0 %v206
  %216 = vmatpush.msra.mxu0 %v205
  %217 = vmatpush.msra.mxu0 %v204
  %218 = vmatpush.msra.mxu0 %v203
  %219 = vmatpush.msra.mxu0 %v202
  %220 = vmatpush.msra.mxu0 %v201
  %221 = vmatpush.msra.mxu0 %v200
  %222 = vmatpush.msra.mxu0 %v199
  %223 = vmatpush.msra.mxu0 %v198
  %224 = vmatpush.msra.mxu0 %v197
  %225 = vmatpush.msra.mxu0 %v196
  %226 = vmatpush.msra.mxu0 %v195
  %227 = vmatmul.f32.gmra.mxu0 %v64
  %v228 = vpop.f32.mrf.mxu0
  %v229 = vadd.f32 0.0, %v228
  %230 = vmatmul.f32.gmra.mxu0 %v65
  %v231 = vpop.f32.mrf.mxu0
  %v232 = vadd.f32 0.0, %v231
  %233 = vmatmul.f32.gmra.mxu0 %v66
  %v234 = vpop.f32.mrf.mxu0
  %v235 = vadd.f32 0.0, %v234
  %236 = vmatmul.f32.gmra.mxu0 %v67
  %v237 = vpop.f32.mrf.mxu0
  %v238 = vadd.f32 0.0, %v237
  %239 = vmatmul.f32.gmra.mxu0 %v68
  %v240 = vpop.f32.mrf.mxu0
  %v241 = vadd.f32 0.0, %v240
  %242 = vmatmul.f32.gmra.mxu0 %v69
  %v243 = vpop.f32.mrf.mxu0
  %v244 = vadd.f32 0.0, %v243
  %245 = vmatmul.f32.gmra.mxu0 %v70
  %v246 = vpop.f32.mrf.mxu0
  %v247 = vadd.f32 0.0, %v246
  %248 = vdwg.mxu0
  %249 = vst [vmem:[#allocation4] sm:$0xff] %v229
  %250 = vst [vmem:[#allocation4 + $0x8] sm:$0xff] %v232
  %251 = vst [vmem:[#allocation4 + $0x10] sm:$0xff] %v235
  %252 = vst [vmem:[#allocation4 + $0x18] sm:$0xff] %v238
  %253 = vst [vmem:[#allocation4 + $0x20] sm:$0xff] %v241
  %254 = vst [vmem:[#allocation4 + $0x28] sm:$0xff] %v244
  %255 = vst [vmem:[#allocation4 + $0x30] sm:$0x7f] %v247
  %v256 = vld [vmem:[%s4] sm:$0xf]
  %v257 = vld [vmem:[#allocation2] ss:$2 sm:$0xff]
  %s258 = scalar_lea.vmem [#allocation2], 16
  %v259 = vld [vmem:[%s258] ss:$2 sm:$0xff]
  %s260 = scalar_lea.vmem [#allocation2], 32
  %v261 = vld [vmem:[%s260] ss:$2 sm:$0xff]
  %s262 = scalar_lea.vmem [#allocation2], 48
  %v263 = vld [vmem:[%s262] ss:$2 sm:$0x7]
  %s264 = scalar_lea.vmem [#allocation3], 1
  %v265 = vld [vmem:[%s264] ss:$2 sm:$0xff]
  %s266 = scalar_lea.vmem [#allocation3], 17
  %v267 = vld [vmem:[%s266] ss:$2 sm:$0xff]
  %s268 = scalar_lea.vmem [#allocation3], 33
  %v269 = vld [vmem:[%s268] ss:$2 sm:$0xff]
  %s270 = scalar_lea.vmem [#allocation3], 49
  %v271 = vld [vmem:[%s270] ss:$2 sm:$0x7]
  %v272 = vadd.f32 %v257, %v265
  %v273 = vadd.f32 %v259, %v267
  %v274 = vadd.f32 %v261, %v269
  %v275 = vadd.f32 %v263, %v271
  %s276 = scalar_lea.vmem [#allocation2], 1
  %v277 = vld [vmem:[%s276] ss:$2 sm:$0xff]
  %s278 = scalar_lea.vmem [#allocation2], 17
  %v279 = vld [vmem:[%s278] ss:$2 sm:$0xff]
  %s280 = scalar_lea.vmem [#allocation2], 33
  %v281 = vld [vmem:[%s280] ss:$2 sm:$0xff]
  %s282 = scalar_lea.vmem [#allocation2], 49
  %v283 = vld [vmem:[%s282] ss:$2 sm:$0x7]
  %s284 = scalar_lea.vmem [#allocation3], 2
  %v285 = vld [vmem:[%s284] ss:$2 sm:$0xff]
  %s286 = scalar_lea.vmem [#allocation3], 18
  %v287 = vld [vmem:[%s286] ss:$2 sm:$0xff]
  %s288 = scalar_lea.vmem [#allocation3], 34
  %v289 = vld [vmem:[%s288] ss:$2 sm:$0xff]
  %s290 = scalar_lea.vmem [#allocation3], 50
  %v291 = vld [vmem:[%s290] ss:$2 sm:$0x7]
  %v292 = vadd.f32 %v277, %v285
  %v293 = vadd.f32 %v279, %v287
  %v294 = vadd.f32 %v281, %v289
  %v295 = vadd.f32 %v283, %v291
  %v296 = vmax.f32 %v272, %v292
  %v297 = vmax.f32 %v273, %v293
  %v298 = vmax.f32 %v274, %v294
  %v299 = vmax.f32 %v275, %v295
  %v300 = vld [vmem:[%s2] sm:$0xff]
  %v301 = vld [vmem:[%s2 + $0x8] sm:$0xff]
  %v302 = vld [vmem:[%s2 + $0x10] sm:$0xff]
  %v303 = vld [vmem:[%s2 + $0x18] sm:$0x7]
  %v304 = vld [vmem:[%s2 + $0x20] sm:$0xff]
  %v305 = vld [vmem:[%s2 + $0x28] sm:$0xff]
  %v306 = vld [vmem:[%s2 + $0x30] sm:$0xff]
  %v307 = vld [vmem:[%s2 + $0x38] sm:$0x7]
  %v308 = vld [vmem:[%s2 + $0x40] sm:$0xff]
  %v309 = vld [vmem:[%s2 + $0x48] sm:$0xff]
  %v310 = vld [vmem:[%s2 + $0x50] sm:$0xff]
  %v311 = vld [vmem:[%s2 + $0x58] sm:$0x7]
  %v312 = vld [vmem:[%s2 + $0x60] sm:$0xff]
  %v313 = vld [vmem:[%s2 + $0x68] sm:$0xff]
  %v314 = vld [vmem:[%s2 + $0x70] sm:$0xff]
  %v315 = vld [vmem:[%s2 + $0x78] sm:$0x7]
  %v316 = vmul.f32 %v296, %v300
  %v317 = vmul.f32 %v297, %v301
  %v318 = vmul.f32 %v298, %v302
  %v319 = vmul.f32 %v299, %v303
  %v320 = vmul.f32 %v296, %v304
  %v321 = vmul.f32 %v297, %v305
  %v322 = vmul.f32 %v298, %v306
  %v323 = vmul.f32 %v299, %v307
  %v324 = vmul.f32 %v296, %v308
  %v325 = vmul.f32 %v297, %v309
  %v326 = vmul.f32 %v298, %v310
  %v327 = vmul.f32 %v299, %v311
  %v328 = vmul.f32 %v296, %v312
  %v329 = vmul.f32 %v297, %v313
  %v330 = vmul.f32 %v298, %v314
  %v331 = vmul.f32 %v299, %v315
  %332 = vadd.xlane.f32.xlu0 %v316
  %v333 = vpop.xlane.xlu0 %332
  %334 = vadd.xlane.f32.xlu0 %v317
  %v335 = vpop.xlane.xlu0 %334
  %336 = vadd.xlane.f32.xlu0 %v318
  %v337 = vpop.xlane.xlu0 %336
  %vm338 = vcmask 1042432
  %v339 = vsel %vm338, %v319, 0.0
  %340 = vadd.xlane.f32.xlu0 %v339
  %v341 = vpop.xlane.xlu0 %340
  %342 = vadd.xlane.f32.xlu0 %v320
  %v343 = vpop.xlane.xlu0 %342
  %344 = vadd.xlane.f32.xlu0 %v321
  %v345 = vpop.xlane.xlu0 %344
  %346 = vadd.xlane.f32.xlu0 %v322
  %v347 = vpop.xlane.xlu0 %346
  %v348 = vsel %vm338, %v323, 0.0
  %349 = vadd.xlane.f32.xlu0 %v348
  %v350 = vpop.xlane.xlu0 %349
  %351 = vadd.xlane.f32.xlu0 %v324
  %v352 = vpop.xlane.xlu0 %351
  %353 = vadd.xlane.f32.xlu0 %v325
  %v354 = vpop.xlane.xlu0 %353
  %355 = vadd.xlane.f32.xlu0 %v326
  %v356 = vpop.xlane.xlu0 %355
  %v357 = vsel %vm338, %v327, 0.0
  %358 = vadd.xlane.f32.xlu0 %v357
  %v359 = vpop.xlane.xlu0 %358
  %360 = vadd.xlane.f32.xlu0 %v328
  %v361 = vpop.xlane.xlu0 %360
  %362 = vadd.xlane.f32.xlu0 %v329
  %v363 = vpop.xlane.xlu0 %362
  %364 = vadd.xlane.f32.xlu0 %v330
  %v365 = vpop.xlane.xlu0 %364
  %v366 = vsel %vm338, %v331, 0.0
  %367 = vadd.xlane.f32.xlu0 %v366
  %v368 = vpop.xlane.xlu0 %367
  %v385 = vperm.slane %v333, %v21
  %v386 = vadd.s32 %v21, 4294967288
  %v387 = vperm.slane %v335, %v386
  %vm388 = vcmask 130112
  %v389 = vsel %vm388, %v387, %v385
  %v390 = vadd.s32 %v21, 4294967280
  %v391 = vperm.slane %v337, %v390
  %vm392 = vcmask 195712
  %v393 = vsel %vm392, %v391, %v389
  %v394 = vadd.s32 %v21, 4294967272
  %v395 = vperm.slane %v341, %v394
  %vm396 = vcmask 261312
  %v397 = vsel %vm396, %v395, %v393
  %v398 = vperm.slane %v343, %v21
  %v399 = vperm.slane %v345, %v386
  %v400 = vsel %vm388, %v399, %v398
  %v401 = vperm.slane %v347, %v390
  %v402 = vsel %vm392, %v401, %v400
  %v403 = vperm.slane %v350, %v394
  %v404 = vsel %vm396, %v403, %v402
  %v405 = vperm.slane %v352, %v21
  %v406 = vperm.slane %v354, %v386
  %v407 = vsel %vm388, %v406, %v405
  %v408 = vperm.slane %v356, %v390
  %v409 = vsel %vm392, %v408, %v407
  %v410 = vperm.slane %v359, %v394
  %v411 = vsel %vm396, %v410, %v409
  %v412 = vperm.slane %v361, %v21
  %v413 = vperm.slane %v363, %v386
  %v414 = vsel %vm388, %v413, %v412
  %v415 = vperm.slane %v365, %v390
  %v416 = vsel %vm392, %v415, %v414
  %v417 = vperm.slane %v368, %v394
  %v418 = vsel %vm396, %v417, %v416
  %vm419 = vcmask 1041409
  %v420 = vsel %vm419, %v404, %v397
  %vm421 = vcmask 1042434
  %v422 = vsel %vm421, %v411, %v420
  %vm423 = vcmask 1043459
  %v424 = vsel %vm423, %v418, %v422
  %vm426 = vcmask 216064
  %v427 = vsel %vm426, %v424, 0.0
  %428 = vadd.xlane.f32.xlu0 %v427
  %v429 = vpop.xlane.xlu0 %428
  %v430 = vadd.f32 %v256, %v429
  %v431 = vld [vmem:[#allocation2] ss:$3 sm:$0xff]
  %s432 = scalar_lea.vmem [#allocation2], 24
  %v433 = vld [vmem:[%s432] ss:$3 sm:$0xff]
  %v434 = vld [vmem:[%s262] ss:$3 sm:$0x1]
  %s435 = scalar_lea.vmem [#allocation3], 1
  %v436 = vld [vmem:[%s435] ss:$3 sm:$0xff]
  %s437 = scalar_lea.vmem [#allocation3], 25
  %v438 = vld [vmem:[%s437] ss:$3 sm:$0xff]
  %s439 = scalar_lea.vmem [#allocation3], 49
  %v440 = vld [vmem:[%s439] ss:$3 sm:$0x1]
  %v441 = vadd.f32 %v431, %v436
  %v442 = vadd.f32 %v433, %v438
  %v443 = vadd.f32 %v434, %v440
  %s444 = scalar_lea.vmem [#allocation4], 2
  %v445 = vld [vmem:[%s444] ss:$3 sm:$0xff]
  %s446 = scalar_lea.vmem [#allocation4], 26
  %v447 = vld [vmem:[%s446] ss:$3 sm:$0xff]
  %s448 = scalar_lea.vmem [#allocation4], 50
  %v449 = vld [vmem:[%s448] ss:$3 sm:$0x1]
  %v450 = vadd.f32 %v441, %v445
  %v451 = vadd.f32 %v442, %v447
  %v452 = vadd.f32 %v443, %v449
  %s453 = scalar_lea.vmem [#allocation2], 1
  %v454 = vld [vmem:[%s453] ss:$3 sm:$0xff]
  %s455 = scalar_lea.vmem [#allocation2], 25
  %v456 = vld [vmem:[%s455] ss:$3 sm:$0xff]
  %s457 = scalar_lea.vmem [#allocation2], 49
  %v458 = vld [vmem:[%s457] ss:$3 sm:$0x1]
  %v459 = vld [vmem:[%s284] ss:$3 sm:$0xff]
  %s460 = scalar_lea.vmem [#allocation3], 26
  %v461 = vld [vmem:[%s460] ss:$3 sm:$0xff]
  %v462 = vld [vmem:[%s290] ss:$3 sm:$0x1]
  %v463 = vadd.f32 %v454, %v459
  %v464 = vadd.f32 %v456, %v461
  %v465 = vadd.f32 %v458, %v462
  %s466 = scalar_lea.vmem [#allocation4], 3
  %v467 = vld [vmem:[%s466] ss:$3 sm:$0xff]
  %s468 = scalar_lea.vmem [#allocation4], 27
  %v469 = vld [vmem:[%s468] ss:$3 sm:$0xff]
  %s470 = scalar_lea.vmem [#allocation4], 51
  %v471 = vld [vmem:[%s470] ss:$3 sm:$0x1]
  %v472 = vadd.f32 %v463, %v467
  %v473 = vadd.f32 %v464, %v469
  %v474 = vadd.f32 %v465, %v471
  %v475 = vmax.f32 %v450, %v472
  %v476 = vmax.f32 %v451, %v473
  %v477 = vmax.f32 %v452, %v474
  %s478 = scalar_lea.vmem [#allocation2], 2
  %v479 = vld [vmem:[%s478] ss:$3 sm:$0xff]
  %s480 = scalar_lea.vmem [#allocation2], 26
  %v481 = vld [vmem:[%s480] ss:$3 sm:$0xff]
  %s482 = scalar_lea.vmem [#allocation2], 50
  %v483 = vld [vmem:[%s482] ss:$3 sm:$0x1]
  %s484 = scalar_lea.vmem [#allocation3], 3
  %v485 = vld [vmem:[%s484] ss:$3 sm:$0xff]
  %s486 = scalar_lea.vmem [#allocation3], 27
  %v487 = vld [vmem:[%s486] ss:$3 sm:$0xff]
  %s488 = scalar_lea.vmem [#allocation3], 51
  %v489 = vld [vmem:[%s488] ss:$3 sm:$0x1]
  %v490 = vadd.f32 %v479, %v485
  %v491 = vadd.f32 %v481, %v487
  %v492 = vadd.f32 %v483, %v489
  %s493 = scalar_lea.vmem [#allocation4], 4
  %v494 = vld [vmem:[%s493] ss:$3 sm:$0xff]
  %s495 = scalar_lea.vmem [#allocation4], 28
  %v496 = vld [vmem:[%s495] ss:$3 sm:$0xff]
  %s497 = scalar_lea.vmem [#allocation4], 52
  %v498 = vld [vmem:[%s497] ss:$3 sm:$0x1]
  %v499 = vadd.f32 %v490, %v494
  %v500 = vadd.f32 %v491, %v496
  %v501 = vadd.f32 %v492, %v498
  %v502 = vmax.f32 %v475, %v499
  %v503 = vmax.f32 %v476, %v500
  %v504 = vmax.f32 %v477, %v501
  %v505 = vld [vmem:[%s3] sm:$0xff]
  %v506 = vld [vmem:[%s3 + $0x8] sm:$0xff]
  %v507 = vld [vmem:[%s3 + $0x10] sm:$0x1]
  %v508 = vld [vmem:[%s3 + $0x18] sm:$0xff]
  %v509 = vld [vmem:[%s3 + $0x20] sm:$0xff]
  %v510 = vld [vmem:[%s3 + $0x28] sm:$0x1]
  %v511 = vld [vmem:[%s3 + $0x30] sm:$0xff]
  %v512 = vld [vmem:[%s3 + $0x38] sm:$0xff]
  %v513 = vld [vmem:[%s3 + $0x40] sm:$0x1]
  %v514 = vld [vmem:[%s3 + $0x48] sm:$0xff]
  %v515 = vld [vmem:[%s3 + $0x50] sm:$0xff]
  %v516 = vld [vmem:[%s3 + $0x58] sm:$0x1]
  %v517 = vmul.f32 %v502, %v505
  %v518 = vmul.f32 %v503, %v506
  %v519 = vmul.f32 %v504, %v507
  %v520 = vmul.f32 %v502, %v508
  %v521 = vmul.f32 %v503, %v509
  %v522 = vmul.f32 %v504, %v510
  %v523 = vmul.f32 %v502, %v511
  %v524 = vmul.f32 %v503, %v512
  %v525 = vmul.f32 %v504, %v513
  %v526 = vmul.f32 %v502, %v514
  %v527 = vmul.f32 %v503, %v515
  %v528 = vmul.f32 %v504, %v516
  %529 = vadd.xlane.f32.xlu0 %v517
  %v530 = vpop.xlane.xlu0 %529
  %531 = vadd.xlane.f32.xlu0 %v518
  %v532 = vpop.xlane.xlu0 %531
  %vm533 = vcmask 1040384
  %v534 = vsel %vm533, %v519, 0.0
  %535 = vadd.xlane.f32.xlu0 %v534
  %v536 = vpop.xlane.xlu0 %535
  %537 = vadd.xlane.f32.xlu0 %v520
  %v538 = vpop.xlane.xlu0 %537
  %539 = vadd.xlane.f32.xlu0 %v521
  %v540 = vpop.xlane.xlu0 %539
  %v541 = vsel %vm533, %v522, 0.0
  %542 = vadd.xlane.f32.xlu0 %v541
  %v543 = vpop.xlane.xlu0 %542
  %544 = vadd.xlane.f32.xlu0 %v523
  %v545 = vpop.xlane.xlu0 %544
  %546 = vadd.xlane.f32.xlu0 %v524
  %v547 = vpop.xlane.xlu0 %546
  %v548 = vsel %vm533, %v525, 0.0
  %549 = vadd.xlane.f32.xlu0 %v548
  %v550 = vpop.xlane.xlu0 %549
  %551 = vadd.xlane.f32.xlu0 %v526
  %v552 = vpop.xlane.xlu0 %551
  %553 = vadd.xlane.f32.xlu0 %v527
  %v554 = vpop.xlane.xlu0 %553
  %v555 = vsel %vm533, %v528, 0.0
  %556 = vadd.xlane.f32.xlu0 %v555
  %v557 = vpop.xlane.xlu0 %556
  %v570 = vperm.slane %v530, %v21
  %v571 = vperm.slane %v532, %v386
  %v572 = vsel %vm388, %v571, %v570
  %v573 = vperm.slane %v536, %v390
  %v574 = vsel %vm392, %v573, %v572
  %v575 = vperm.slane %v538, %v21
  %v576 = vperm.slane %v540, %v386
  %v577 = vsel %vm388, %v576, %v575
  %v578 = vperm.slane %v543, %v390
  %v579 = vsel %vm392, %v578, %v577
  %v580 = vperm.slane %v545, %v21
  %v581 = vperm.slane %v547, %v386
  %v582 = vsel %vm388, %v581, %v580
  %v583 = vperm.slane %v550, %v390
  %v584 = vsel %vm392, %v583, %v582
  %v585 = vperm.slane %v552, %v21
  %v586 = vperm.slane %v554, %v386
  %v587 = vsel %vm388, %v586, %v585
  %v588 = vperm.slane %v557, %v390
  %v589 = vsel %vm392, %v588, %v587
  %v590 = vsel %vm419, %v579, %v574
  %v591 = vsel %vm421, %v584, %v590
  %v592 = vsel %vm423, %v589, %v591
  %vm594 = vcmask 134144
  %v595 = vsel %vm594, %v592, 0.0
  %596 = vadd.xlane.f32.xlu0 %v595
  %v597 = vpop.xlane.xlu0 %596
  %v598 = vadd.f32 %v430, %v597
  %vm599 = vcmask 3072
  %v600 = vsel %vm599, %v598, -inf
  %v601 = vrot.slane %v600, 4
  %v602 = vmax.f32 %v600, %v601
  %v603 = vrot.slane %v602, 2
  %v604 = vmax.f32 %v602, %v603
  %v605 = vrot.slane %v604, 1
  %v606 = vmax.f32 %v604, %v605
  %v607 = vsub.f32 %v598, %v606
  %v608 = vmul.f32 %v607, 1.442695
  %v609 = vpow.pop %v608
  %v610 = vsel %vm599, %v609, 0.0
  %v611 = vrot.slane %v610, 4
  %v612 = vadd.f32 %v610, %v611
  %v613 = vrot.slane %v612, 2
  %v614 = vadd.f32 %v612, %v613
  %v615 = vrot.slane %v614, 1
  %v616 = vadd.f32 %v614, %v615
  %v617 = vlog2.pop %v616
  %v618 = vmul.f32 %v617, 0.6931472
  %v619 = vsub.f32 %v607, %v618
  %620 = vst.msk [vmem:[%s5] sm:$0xf] %vm599, %v619
  %s621 = scalar_lea.vmem %s0, 56
  %v622 = vld [vmem:[%s621] sm:$0xff]
  %v623 = vld [vmem:[%s621 + $0x8] sm:$0xff]
  %v624 = vld [vmem:[%s621 + $0x10] sm:$0xff]
  %v625 = vld [vmem:[%s621 + $0x18] sm:$0xff]
  %v626 = vld [vmem:[%s621 + $0x20] sm:$0xff]
  %v627 = vld [vmem:[%s621 + $0x28] sm:$0xff]
  %v628 = vld [vmem:[%s621 + $0x30] sm:$0x7f]
  %629 = vset.pattern.permute.xlu0 0
  %630 = vperm.xlu0 %629, %v622
  %v631 = vpop.permute.xlu0 %630
  %632 = vset.pattern.permute.xlu0 0
  %633 = vperm.xlu0 %632, %v623
  %v634 = vpop.permute.xlu0 %633
  %635 = vset.pattern.permute.xlu0 0
  %636 = vperm.xlu0 %635, %v624
  %v637 = vpop.permute.xlu0 %636
  %638 = vset.pattern.permute.xlu0 0
  %639 = vperm.xlu0 %638, %v625
  %v640 = vpop.permute.xlu0 %639
  %641 = vset.pattern.permute.xlu0 0
  %642 = vperm.xlu0 %641, %v626
  %v643 = vpop.permute.xlu0 %642
  %644 = vset.pattern.permute.xlu0 0
  %645 = vperm.xlu0 %644, %v627
  %v646 = vpop.permute.xlu0 %645
  %647 = vset.pattern.permute.xlu0 0
  %648 = vperm.xlu0 %647, %v628
  %v649 = vpop.permute.xlu0 %648
  %vm650 = vcmp.eq.s32.totalorder %v21, %v631
  %vm651 = vcmp.eq.s32.totalorder %v21, %v634
  %vm652 = vcmp.eq.s32.totalorder %v21, %v637
  %vm653 = vcmp.eq.s32.totalorder %v21, %v640
  %vm654 = vcmp.eq.s32.totalorder %v21, %v643
  %vm655 = vcmp.eq.s32.totalorder %v21, %v646
  %vm656 = vcmp.eq.s32.totalorder %v21, %v649
  %v657 = vsel %vm650, 1, 0
  %v658 = vsel %vm651, 1, 0
  %v659 = vsel %vm652, 1, 0
  %v660 = vsel %vm653, 1, 0
  %v661 = vsel %vm654, 1, 0
  %v662 = vsel %vm655, 1, 0
  %v663 = vsel %vm656, 1, 0
  %v664 = vcvt.s32.f32 %v657
  %v665 = vcvt.s32.f32 %v658
  %v666 = vcvt.s32.f32 %v659
  %v667 = vcvt.s32.f32 %v660
  %v668 = vcvt.s32.f32 %v661
  %v669 = vcvt.s32.f32 %v662
  %v670 = vcvt.s32.f32 %v663
  %v671 = vld [vmem:[%s1] sm:$0xff]
  %v672 = vld [vmem:[%s1 + $0x8] sm:$0xff]
  %v673 = vld [vmem:[%s1 + $0x10] sm:$0xff]
  %v674 = vld [vmem:[%s1 + $0x18] sm:$0xff]
  %v675 = vld [vmem:[%s1 + $0x20] sm:$0xff]
  %v676 = vld [vmem:[%s1 + $0x28] sm:$0xff]
  %v677 = vld [vmem:[%s1 + $0x30] sm:$0xff]
  %v678 = vld [vmem:[%s1 + $0x38] sm:$0xff]
  %v679 = vld [vmem:[%s1 + $0x40] sm:$0xff]
  %v680 = vld [vmem:[%s1 + $0x48] sm:$0xff]
  %v681 = vld [vmem:[%s1 + $0x50] sm:$0xff]
  %v682 = vld [vmem:[%s1 + $0x58] sm:$0xff]
  %v683 = vld [vmem:[%s1 + $0x60] sm:$0xff]
  %v684 = vld [vmem:[%s1 + $0x68] sm:$0xff]
  %v685 = vld [vmem:[%s1 + $0x70] sm:$0xff]
  %v686 = vld [vmem:[%s1 + $0x78] sm:$0xff]
  %687 = vmatpush.msra.mxu0 %v686
  %688 = vmatpush.msra.mxu0 %v685
  %689 = vmatpush.msra.mxu0 %v684
  %690 = vmatpush.msra.mxu0 %v683
  %691 = vmatpush.msra.mxu0 %v682
  %692 = vmatpush.msra.mxu0 %v681
  %693 = vmatpush.msra.mxu0 %v680
  %694 = vmatpush.msra.mxu0 %v679
  %695 = vmatpush.msra.mxu0 %v678
  %696 = vmatpush.msra.mxu0 %v677
  %697 = vmatpush.msra.mxu0 %v676
  %698 = vmatpush.msra.mxu0 %v675
  %699 = vmatpush.msra.mxu0 %v674
  %700 = vmatpush.msra.mxu0 %v673
  %701 = vmatpush.msra.mxu0 %v672
  %702 = vmatpush.msra.mxu0 %v671
  %703 = vmatmul.f32.gmra.mxu0 %v664
  %v704 = vpop.f32.mrf.mxu0
  %v705 = vadd.f32 0.0, %v704
  %706 = vmatmul.f32.gmra.mxu0 %v665
  %v707 = vpop.f32.mrf.mxu0
  %v708 = vadd.f32 0.0, %v707
  %709 = vmatmul.f32.gmra.mxu0 %v666
  %v710 = vpop.f32.mrf.mxu0
  %v711 = vadd.f32 0.0, %v710
  %712 = vmatmul.f32.gmra.mxu0 %v667
  %v713 = vpop.f32.mrf.mxu0
  %v714 = vadd.f32 0.0, %v713
  %715 = vmatmul.f32.gmra.mxu0 %v668
  %v716 = vpop.f32.mrf.mxu0
  %v717 = vadd.f32 0.0, %v716
  %718 = vmatmul.f32.gmra.mxu0 %v669
  %v719 = vpop.f32.mrf.mxu0
  %v720 = vadd.f32 0.0, %v719
  %721 = vmatmul.f32.gmra.mxu0 %v670
  %v722 = vpop.f32.mrf.mxu0
  %v723 = vadd.f32 0.0, %v722
  %724 = vdwg.mxu0
  %725 = vst [vmem:[#allocation2] sm:$0xff] %v705
  %726 = vst [vmem:[#allocation2 + $0x8] sm:$0xff] %v708
  %727 = vst [vmem:[#allocation2 + $0x10] sm:$0xff] %v711
  %728 = vst [vmem:[#allocation2 + $0x18] sm:$0xff] %v714
  %729 = vst [vmem:[#allocation2 + $0x20] sm:$0xff] %v717
  %730 = vst [vmem:[#allocation2 + $0x28] sm:$0xff] %v720
  %731 = vst [vmem:[#allocation2 + $0x30] sm:$0x7f] %v723
  %v732 = vld [vmem:[%s132] sm:$0xff]
  %v733 = vld [vmem:[%s132 + $0x8] sm:$0xff]
  %v734 = vld [vmem:[%s132 + $0x10] sm:$0xff]
  %v735 = vld [vmem:[%s132 + $0x18] sm:$0xff]
  %v736 = vld [vmem:[%s132 + $0x20] sm:$0xff]
  %v737 = vld [vmem:[%s132 + $0x28] sm:$0xff]
  %v738 = vld [vmem:[%s132 + $0x30] sm:$0xff]
  %v739 = vld [vmem:[%s132 + $0x38] sm:$0xff]
  %v740 = vld [vmem:[%s132 + $0x40] sm:$0xff]
  %v741 = vld [vmem:[%s132 + $0x48] sm:$0xff]
  %v742 = vld [vmem:[%s132 + $0x50] sm:$0xff]
  %v743 = vld [vmem:[%s132 + $0x58] sm:$0xff]
  %v744 = vld [vmem:[%s132 + $0x60] sm:$0xff]
  %v745 = vld [vmem:[%s132 + $0x68] sm:$0xff]
  %v746 = vld [vmem:[%s132 + $0x70] sm:$0xff]
  %v747 = vld [vmem:[%s132 + $0x78] sm:$0xff]
  %748 = vmatpush.msra.mxu0 %v747
  %749 = vmatpush.msra.mxu0 %v746
  %750 = vmatpush.msra.mxu0 %v745
  %751 = vmatpush.msra.mxu0 %v744
  %752 = vmatpush.msra.mxu0 %v743
  %753 = vmatpush.msra.mxu0 %v742
  %754 = vmatpush.msra.mxu0 %v741
  %755 = vmatpush.msra.mxu0 %v740
  %756 = vmatpush.msra.mxu0 %v739
  %757 = vmatpush.msra.mxu0 %v738
  %758 = vmatpush.msra.mxu0 %v737
  %759 = vmatpush.msra.mxu0 %v736
  %760 = vmatpush.msra.mxu0 %v735
  %761 = vmatpush.msra.mxu0 %v734
  %762 = vmatpush.msra.mxu0 %v733
  %763 = vmatpush.msra.mxu0 %v732
  %764 = vmatmul.f32.gmra.mxu0 %v664
  %v765 = vpop.f32.mrf.mxu0
  %v766 = vadd.f32 0.0, %v765
  %767 = vmatmul.f32.gmra.mxu0 %v665
  %v768 = vpop.f32.mrf.mxu0
  %v769 = vadd.f32 0.0, %v768
  %770 = vmatmul.f32.gmra.mxu0 %v666
  %v771 = vpop.f32.mrf.mxu0
  %v772 = vadd.f32 0.0, %v771
  %773 = vmatmul.f32.gmra.mxu0 %v667
  %v774 = vpop.f32.mrf.mxu0
  %v775 = vadd.f32 0.0, %v774
  %776 = vmatmul.f32.gmra.mxu0 %v668
  %v777 = vpop.f32.mrf.mxu0
  %v778 = vadd.f32 0.0, %v777
  %779 = vmatmul.f32.gmra.mxu0 %v669
  %v780 = vpop.f32.mrf.mxu0
  %v781 = vadd.f32 0.0, %v780
  %782 = vmatmul.f32.gmra.mxu0 %v670
  %v783 = vpop.f32.mrf.mxu0
  %v784 = vadd.f32 0.0, %v783
  %785 = vdwg.mxu0
  %786 = vst [vmem:[#allocation3] sm:$0xff] %v766
  %787 = vst [vmem:[#allocation3 + $0x8] sm:$0xff] %v769
  %788 = vst [vmem:[#allocation3 + $0x10] sm:$0xff] %v772
  %789 = vst [vmem:[#allocation3 + $0x18] sm:$0xff] %v775
  %790 = vst [vmem:[#allocation3 + $0x20] sm:$0xff] %v778
  %791 = vst [vmem:[#allocation3 + $0x28] sm:$0xff] %v781
  %792 = vst [vmem:[#allocation3 + $0x30] sm:$0x7f] %v784
  %v793 = vld [vmem:[%s194] sm:$0xff]
  %v794 = vld [vmem:[%s194 + $0x8] sm:$0xff]
  %v795 = vld [vmem:[%s194 + $0x10] sm:$0xff]
  %v796 = vld [vmem:[%s194 + $0x18] sm:$0xff]
  %v797 = vld [vmem:[%s194 + $0x20] sm:$0xff]
  %v798 = vld [vmem:[%s194 + $0x28] sm:$0xff]
  %v799 = vld [vmem:[%s194 + $0x30] sm:$0xff]
  %v800 = vld [vmem:[%s194 + $0x38] sm:$0xff]
  %v801 = vld [vmem:[%s194 + $0x40] sm:$0xff]
  %v802 = vld [vmem:[%s194 + $0x48] sm:$0xff]
  %v803 = vld [vmem:[%s194 + $0x50] sm:$0xff]
  %v804 = vld [vmem:[%s194 + $0x58] sm:$0xff]
  %v805 = vld [vmem:[%s194 + $0x60] sm:$0xff]
  %v806 = vld [vmem:[%s194 + $0x68] sm:$0xff]
  %v807 = vld [vmem:[%s194 + $0x70] sm:$0xff]
  %v808 = vld [vmem:[%s194 + $0x78] sm:$0xff]
  %809 = vmatpush.msra.mxu0 %v808
  %810 = vmatpush.msra.mxu0 %v807
  %811 = vmatpush.msra.mxu0 %v806
  %812 = vmatpush.msra.mxu0 %v805
  %813 = vmatpush.msra.mxu0 %v804
  %814 = vmatpush.msra.mxu0 %v803
  %815 = vmatpush.msra.mxu0 %v802
  %816 = vmatpush.msra.mxu0 %v801
  %817 = vmatpush.msra.mxu0 %v800
  %818 = vmatpush.msra.mxu0 %v799
  %819 = vmatpush.msra.mxu0 %v798
  %820 = vmatpush.msra.mxu0 %v797
  %821 = vmatpush.msra.mxu0 %v796
  %822 = vmatpush.msra.mxu0 %v795
  %823 = vmatpush.msra.mxu0 %v794
  %824 = vmatpush.msra.mxu0 %v793
  %825 = vmatmul.f32.gmra.mxu0 %v664
  %v826 = vpop.f32.mrf.mxu0
  %v827 = vadd.f32 0.0, %v826
  %828 = vmatmul.f32.gmra.mxu0 %v665
  %v829 = vpop.f32.mrf.mxu0
  %v830 = vadd.f32 0.0, %v829
  %831 = vmatmul.f32.gmra.mxu0 %v666
  %v832 = vpop.f32.mrf.mxu0
  %v833 = vadd.f32 0.0, %v832
  %834 = vmatmul.f32.gmra.mxu0 %v667
  %v835 = vpop.f32.mrf.mxu0
  %v836 = vadd.f32 0.0, %v835
  %837 = vmatmul.f32.gmra.mxu0 %v668
  %v838 = vpop.f32.mrf.mxu0
  %v839 = vadd.f32 0.0, %v838
  %840 = vmatmul.f32.gmra.mxu0 %v669
  %v841 = vpop.f32.mrf.mxu0
  %v842 = vadd.f32 0.0, %v841
  %843 = vmatmul.f32.gmra.mxu0 %v670
  %v844 = vpop.f32.mrf.mxu0
  %v845 = vadd.f32 0.0, %v844
  %846 = vdwg.mxu0
  %847 = vst [vmem:[#allocation4] sm:$0xff] %v827
  %848 = vst [vmem:[#allocation4 + $0x8] sm:$0xff] %v830
  %849 = vst [vmem:[#allocation4 + $0x10] sm:$0xff] %v833
  %850 = vst [vmem:[#allocation4 + $0x18] sm:$0xff] %v836
  %851 = vst [vmem:[#allocation4 + $0x20] sm:$0xff] %v839
  %852 = vst [vmem:[#allocation4 + $0x28] sm:$0xff] %v842
  %853 = vst [vmem:[#allocation4 + $0x30] sm:$0x7f] %v845
  %v854 = vld [vmem:[%s4] sm:$0xf]
  %v855 = vld [vmem:[#allocation2] ss:$2 sm:$0xff]
  %v856 = vld [vmem:[%s258] ss:$2 sm:$0xff]
  %v857 = vld [vmem:[%s260] ss:$2 sm:$0xff]
  %v858 = vld [vmem:[%s262] ss:$2 sm:$0x7]
  %v859 = vld [vmem:[%s264] ss:$2 sm:$0xff]
  %v860 = vld [vmem:[%s266] ss:$2 sm:$0xff]
  %v861 = vld [vmem:[%s268] ss:$2 sm:$0xff]
  %v862 = vld [vmem:[%s270] ss:$2 sm:$0x7]
  %v863 = vadd.f32 %v855, %v859
  %v864 = vadd.f32 %v856, %v860
  %v865 = vadd.f32 %v857, %v861
  %v866 = vadd.f32 %v858, %v862
  %v867 = vld [vmem:[%s276] ss:$2 sm:$0xff]
  %v868 = vld [vmem:[%s278] ss:$2 sm:$0xff]
  %v869 = vld [vmem:[%s280] ss:$2 sm:$0xff]
  %v870 = vld [vmem:[%s282] ss:$2 sm:$0x7]
  %v871 = vld [vmem:[%s284] ss:$2 sm:$0xff]
  %v872 = vld [vmem:[%s286] ss:$2 sm:$0xff]
  %v873 = vld [vmem:[%s288] ss:$2 sm:$0xff]
  %v874 = vld [vmem:[%s290] ss:$2 sm:$0x7]
  %v875 = vadd.f32 %v867, %v871
  %v876 = vadd.f32 %v868, %v872
  %v877 = vadd.f32 %v869, %v873
  %v878 = vadd.f32 %v870, %v874
  %v879 = vmax.f32 %v863, %v875
  %v880 = vmax.f32 %v864, %v876
  %v881 = vmax.f32 %v865, %v877
  %v882 = vmax.f32 %v866, %v878
  %v883 = vld [vmem:[%s2] sm:$0xff]
  %v884 = vld [vmem:[%s2 + $0x8] sm:$0xff]
  %v885 = vld [vmem:[%s2 + $0x10] sm:$0xff]
  %v886 = vld [vmem:[%s2 + $0x18] sm:$0x7]
  %v887 = vld [vmem:[%s2 + $0x20] sm:$0xff]
  %v888 = vld [vmem:[%s2 + $0x28] sm:$0xff]
  %v889 = vld [vmem:[%s2 + $0x30] sm:$0xff]
  %v890 = vld [vmem:[%s2 + $0x38] sm:$0x7]
  %v891 = vld [vmem:[%s2 + $0x40] sm:$0xff]
  %v892 = vld [vmem:[%s2 + $0x48] sm:$0xff]
  %v893 = vld [vmem:[%s2 + $0x50] sm:$0xff]
  %v894 = vld [vmem:[%s2 + $0x58] sm:$0x7]
  %v895 = vld [vmem:[%s2 + $0x60] sm:$0xff]
  %v896 = vld [vmem:[%s2 + $0x68] sm:$0xff]
  %v897 = vld [vmem:[%s2 + $0x70] sm:$0xff]
  %v898 = vld [vmem:[%s2 + $0x78] sm:$0x7]
  %v899 = vmul.f32 %v879, %v883
  %v900 = vmul.f32 %v880, %v884
  %v901 = vmul.f32 %v881, %v885
  %v902 = vmul.f32 %v882, %v886
  %v903 = vmul.f32 %v879, %v887
  %v904 = vmul.f32 %v880, %v888
  %v905 = vmul.f32 %v881, %v889
  %v906 = vmul.f32 %v882, %v890
  %v907 = vmul.f32 %v879, %v891
  %v908 = vmul.f32 %v880, %v892
  %v909 = vmul.f32 %v881, %v893
  %v910 = vmul.f32 %v882, %v894
  %v911 = vmul.f32 %v879, %v895
  %v912 = vmul.f32 %v880, %v896
  %v913 = vmul.f32 %v881, %v897
  %v914 = vmul.f32 %v882, %v898
  %915 = vadd.xlane.f32.xlu0 %v899
  %v916 = vpop.xlane.xlu0 %915
  %917 = vadd.xlane.f32.xlu0 %v900
  %v918 = vpop.xlane.xlu0 %917
  %919 = vadd.xlane.f32.xlu0 %v901
  %v920 = vpop.xlane.xlu0 %919
  %v921 = vsel %vm338, %v902, 0.0
  %922 = vadd.xlane.f32.xlu0 %v921
  %v923 = vpop.xlane.xlu0 %922
  %924 = vadd.xlane.f32.xlu0 %v903
  %v925 = vpop.xlane.xlu0 %924
  %926 = vadd.xlane.f32.xlu0 %v904
  %v927 = vpop.xlane.xlu0 %926
  %928 = vadd.xlane.f32.xlu0 %v905
  %v929 = vpop.xlane.xlu0 %928
  %v930 = vsel %vm338, %v906, 0.0
  %931 = vadd.xlane.f32.xlu0 %v930
  %v932 = vpop.xlane.xlu0 %931
  %933 = vadd.xlane.f32.xlu0 %v907
  %v934 = vpop.xlane.xlu0 %933
  %935 = vadd.xlane.f32.xlu0 %v908
  %v936 = vpop.xlane.xlu0 %935
  %937 = vadd.xlane.f32.xlu0 %v909
  %v938 = vpop.xlane.xlu0 %937
  %v939 = vsel %vm338, %v910, 0.0
  %940 = vadd.xlane.f32.xlu0 %v939
  %v941 = vpop.xlane.xlu0 %940
  %942 = vadd.xlane.f32.xlu0 %v911
  %v943 = vpop.xlane.xlu0 %942
  %944 = vadd.xlane.f32.xlu0 %v912
  %v945 = vpop.xlane.xlu0 %944
  %946 = vadd.xlane.f32.xlu0 %v913
  %v947 = vpop.xlane.xlu0 %946
  %v948 = vsel %vm338, %v914, 0.0
  %949 = vadd.xlane.f32.xlu0 %v948
  %v950 = vpop.xlane.xlu0 %949
  %v967 = vperm.slane %v916, %v21
  %v968 = vperm.slane %v918, %v386
  %v969 = vsel %vm388, %v968, %v967
  %v970 = vperm.slane %v920, %v390
  %v971 = vsel %vm392, %v970, %v969
  %v972 = vperm.slane %v923, %v394
  %v973 = vsel %vm396, %v972, %v971
  %v974 = vperm.slane %v925, %v21
  %v975 = vperm.slane %v927, %v386
  %v976 = vsel %vm388, %v975, %v974
  %v977 = vperm.slane %v929, %v390
  %v978 = vsel %vm392, %v977, %v976
  %v979 = vperm.slane %v932, %v394
  %v980 = vsel %vm396, %v979, %v978
  %v981 = vperm.slane %v934, %v21
  %v982 = vperm.slane %v936, %v386
  %v983 = vsel %vm388, %v982, %v981
  %v984 = vperm.slane %v938, %v390
  %v985 = vsel %vm392, %v984, %v983
  %v986 = vperm.slane %v941, %v394
  %v987 = vsel %vm396, %v986, %v985
  %v988 = vperm.slane %v943, %v21
  %v989 = vperm.slane %v945, %v386
  %v990 = vsel %vm388, %v989, %v988
  %v991 = vperm.slane %v947, %v390
  %v992 = vsel %vm392, %v991, %v990
  %v993 = vperm.slane %v950, %v394
  %v994 = vsel %vm396, %v993, %v992
  %v995 = vsel %vm419, %v980, %v973
  %v996 = vsel %vm421, %v987, %v995
  %v997 = vsel %vm423, %v994, %v996
  %v999 = vsel %vm426, %v997, 0.0
  %1000 = vadd.xlane.f32.xlu0 %v999
  %v1001 = vpop.xlane.xlu0 %1000
  %v1002 = vadd.f32 %v854, %v1001
  %v1003 = vld [vmem:[#allocation2] ss:$3 sm:$0xff]
  %v1004 = vld [vmem:[%s432] ss:$3 sm:$0xff]
  %v1005 = vld [vmem:[%s262] ss:$3 sm:$0x1]
  %v1006 = vld [vmem:[%s435] ss:$3 sm:$0xff]
  %v1007 = vld [vmem:[%s437] ss:$3 sm:$0xff]
  %v1008 = vld [vmem:[%s439] ss:$3 sm:$0x1]
  %v1009 = vadd.f32 %v1003, %v1006
  %v1010 = vadd.f32 %v1004, %v1007
  %v1011 = vadd.f32 %v1005, %v1008
  %v1012 = vld [vmem:[%s444] ss:$3 sm:$0xff]
  %v1013 = vld [vmem:[%s446] ss:$3 sm:$0xff]
  %v1014 = vld [vmem:[%s448] ss:$3 sm:$0x1]
  %v1015 = vadd.f32 %v1009, %v1012
  %v1016 = vadd.f32 %v1010, %v1013
  %v1017 = vadd.f32 %v1011, %v1014
  %v1018 = vld [vmem:[%s453] ss:$3 sm:$0xff]
  %v1019 = vld [vmem:[%s455] ss:$3 sm:$0xff]
  %v1020 = vld [vmem:[%s457] ss:$3 sm:$0x1]
  %v1021 = vld [vmem:[%s284] ss:$3 sm:$0xff]
  %v1022 = vld [vmem:[%s460] ss:$3 sm:$0xff]
  %v1023 = vld [vmem:[%s290] ss:$3 sm:$0x1]
  %v1024 = vadd.f32 %v1018, %v1021
  %v1025 = vadd.f32 %v1019, %v1022
  %v1026 = vadd.f32 %v1020, %v1023
  %v1027 = vld [vmem:[%s466] ss:$3 sm:$0xff]
  %v1028 = vld [vmem:[%s468] ss:$3 sm:$0xff]
  %v1029 = vld [vmem:[%s470] ss:$3 sm:$0x1]
  %v1030 = vadd.f32 %v1024, %v1027
  %v1031 = vadd.f32 %v1025, %v1028
  %v1032 = vadd.f32 %v1026, %v1029
  %v1033 = vmax.f32 %v1015, %v1030
  %v1034 = vmax.f32 %v1016, %v1031
  %v1035 = vmax.f32 %v1017, %v1032
  %v1036 = vld [vmem:[%s478] ss:$3 sm:$0xff]
  %v1037 = vld [vmem:[%s480] ss:$3 sm:$0xff]
  %v1038 = vld [vmem:[%s482] ss:$3 sm:$0x1]
  %v1039 = vld [vmem:[%s484] ss:$3 sm:$0xff]
  %v1040 = vld [vmem:[%s486] ss:$3 sm:$0xff]
  %v1041 = vld [vmem:[%s488] ss:$3 sm:$0x1]
  %v1042 = vadd.f32 %v1036, %v1039
  %v1043 = vadd.f32 %v1037, %v1040
  %v1044 = vadd.f32 %v1038, %v1041
  %v1045 = vld [vmem:[%s493] ss:$3 sm:$0xff]
  %v1046 = vld [vmem:[%s495] ss:$3 sm:$0xff]
  %v1047 = vld [vmem:[%s497] ss:$3 sm:$0x1]
  %v1048 = vadd.f32 %v1042, %v1045
  %v1049 = vadd.f32 %v1043, %v1046
  %v1050 = vadd.f32 %v1044, %v1047
  %v1051 = vmax.f32 %v1033, %v1048
  %v1052 = vmax.f32 %v1034, %v1049
  %v1053 = vmax.f32 %v1035, %v1050
  %v1054 = vld [vmem:[%s3] sm:$0xff]
  %v1055 = vld [vmem:[%s3 + $0x8] sm:$0xff]
  %v1056 = vld [vmem:[%s3 + $0x10] sm:$0x1]
  %v1057 = vld [vmem:[%s3 + $0x18] sm:$0xff]
  %v1058 = vld [vmem:[%s3 + $0x20] sm:$0xff]
  %v1059 = vld [vmem:[%s3 + $0x28] sm:$0x1]
  %v1060 = vld [vmem:[%s3 + $0x30] sm:$0xff]
  %v1061 = vld [vmem:[%s3 + $0x38] sm:$0xff]
  %v1062 = vld [vmem:[%s3 + $0x40] sm:$0x1]
  %v1063 = vld [vmem:[%s3 + $0x48] sm:$0xff]
  %v1064 = vld [vmem:[%s3 + $0x50] sm:$0xff]
  %v1065 = vld [vmem:[%s3 + $0x58] sm:$0x1]
  %v1066 = vmul.f32 %v1051, %v1054
  %v1067 = vmul.f32 %v1052, %v1055
  %v1068 = vmul.f32 %v1053, %v1056
  %v1069 = vmul.f32 %v1051, %v1057
  %v1070 = vmul.f32 %v1052, %v1058
  %v1071 = vmul.f32 %v1053, %v1059
  %v1072 = vmul.f32 %v1051, %v1060
  %v1073 = vmul.f32 %v1052, %v1061
  %v1074 = vmul.f32 %v1053, %v1062
  %v1075 = vmul.f32 %v1051, %v1063
  %v1076 = vmul.f32 %v1052, %v1064
  %v1077 = vmul.f32 %v1053, %v1065
  %1078 = vadd.xlane.f32.xlu0 %v1066
  %v1079 = vpop.xlane.xlu0 %1078
  %1080 = vadd.xlane.f32.xlu0 %v1067
  %v1081 = vpop.xlane.xlu0 %1080
  %v1082 = vsel %vm533, %v1068, 0.0
  %1083 = vadd.xlane.f32.xlu0 %v1082
  %v1084 = vpop.xlane.xlu0 %1083
  %1085 = vadd.xlane.f32.xlu0 %v1069
  %v1086 = vpop.xlane.xlu0 %1085
  %1087 = vadd.xlane.f32.xlu0 %v1070
  %v1088 = vpop.xlane.xlu0 %1087
  %v1089 = vsel %vm533, %v1071, 0.0
  %1090 = vadd.xlane.f32.xlu0 %v1089
  %v1091 = vpop.xlane.xlu0 %1090
  %1092 = vadd.xlane.f32.xlu0 %v1072
  %v1093 = vpop.xlane.xlu0 %1092
  %1094 = vadd.xlane.f32.xlu0 %v1073
  %v1095 = vpop.xlane.xlu0 %1094
  %v1096 = vsel %vm533, %v1074, 0.0
  %1097 = vadd.xlane.f32.xlu0 %v1096
  %v1098 = vpop.xlane.xlu0 %1097
  %1099 = vadd.xlane.f32.xlu0 %v1075
  %v1100 = vpop.xlane.xlu0 %1099
  %1101 = vadd.xlane.f32.xlu0 %v1076
  %v1102 = vpop.xlane.xlu0 %1101
  %v1103 = vsel %vm533, %v1077, 0.0
  %1104 = vadd.xlane.f32.xlu0 %v1103
  %v1105 = vpop.xlane.xlu0 %1104
  %v1118 = vperm.slane %v1079, %v21
  %v1119 = vperm.slane %v1081, %v386
  %v1120 = vsel %vm388, %v1119, %v1118
  %v1121 = vperm.slane %v1084, %v390
  %v1122 = vsel %vm392, %v1121, %v1120
  %v1123 = vperm.slane %v1086, %v21
  %v1124 = vperm.slane %v1088, %v386
  %v1125 = vsel %vm388, %v1124, %v1123
  %v1126 = vperm.slane %v1091, %v390
  %v1127 = vsel %vm392, %v1126, %v1125
  %v1128 = vperm.slane %v1093, %v21
  %v1129 = vperm.slane %v1095, %v386
  %v1130 = vsel %vm388, %v1129, %v1128
  %v1131 = vperm.slane %v1098, %v390
  %v1132 = vsel %vm392, %v1131, %v1130
  %v1133 = vperm.slane %v1100, %v21
  %v1134 = vperm.slane %v1102, %v386
  %v1135 = vsel %vm388, %v1134, %v1133
  %v1136 = vperm.slane %v1105, %v390
  %v1137 = vsel %vm392, %v1136, %v1135
  %v1138 = vsel %vm419, %v1127, %v1122
  %v1139 = vsel %vm421, %v1132, %v1138
  %v1140 = vsel %vm423, %v1137, %v1139
  %v1142 = vsel %vm594, %v1140, 0.0
  %1143 = vadd.xlane.f32.xlu0 %v1142
  %v1144 = vpop.xlane.xlu0 %1143
  %v1145 = vadd.f32 %v1002, %v1144
  %v1146 = vsel %vm599, %v1145, -inf
  %v1147 = vrot.slane %v1146, 4
  %v1148 = vmax.f32 %v1146, %v1147
  %v1149 = vrot.slane %v1148, 2
  %v1150 = vmax.f32 %v1148, %v1149
  %v1151 = vrot.slane %v1150, 1
  %v1152 = vmax.f32 %v1150, %v1151
  %v1153 = vsub.f32 %v1145, %v1152
  %v1154 = vmul.f32 %v1153, 1.442695
  %v1155 = vpow.pop %v1154
  %v1156 = vsel %vm599, %v1155, 0.0
  %v1157 = vrot.slane %v1156, 4
  %v1158 = vadd.f32 %v1156, %v1157
  %v1159 = vrot.slane %v1158, 2
  %v1160 = vadd.f32 %v1158, %v1159
  %v1161 = vrot.slane %v1160, 1
  %v1162 = vadd.f32 %v1160, %v1161
  %v1163 = vlog2.pop %v1162
  %v1164 = vmul.f32 %v1163, 0.6931472
  %v1165 = vsub.f32 %v1153, %v1164
  %s1166 = scalar_lea.vmem %s5, 4
  %1167 = vst.msk [vmem:[%s1166] sm:$0xf] %vm599, %v1165
  // Predicated region
  $region22: #{tpu_custom_call.1} parent=0 // pred_check
    _
  $region23: #{tpu_custom_call.1} parent=0 // pred_check_branch
    %1169 = sbr.rel (0) target = $region25
  $region24: #{tpu_custom_call.1} parent=0 // pred_region
    _
  $region25: #{tpu_custom_call.1} parent=0 // pred_fallthru
    _
  // Predicated region
  $region26: #{tpu_custom_call.1} parent=0 // pred_check
    _
  $region27: #{tpu_custom_call.1} parent=0 // pred_check_branch
    %1171 = sbr.rel (0) target = $region29
  $region28: #{tpu_custom_call.1} parent=0 // pred_region
    _
  $region29: #{tpu_custom_call.1} parent=0 // pred_fallthru
    _

</llo_original>
